<compile_context>
chip_gen: v5e
topology: v5e:2x2
jax: 0.10.0
libtpu: 0.0.40
codegen_flags: <defaults>
</compile_context>

<pallas_src>
import math

import jax
import jax.numpy as jnp
from jax import lax
from jax.experimental import pallas as pl
from jax.experimental.pallas import tpu as pltpu  # noqa: F401  (not needed at this size)

# Model hyper-parameters (small, deterministic synthetic config).
B = 2          # batch
S = 8          # seq length
D_MODEL = 32   # d_model
N_HEAD = 4     # heads
D_FFN = 64     # ffn hidden
D_K = D_MODEL // N_HEAD
LN_EPS = 1e-5


def _layer_norm(x, gamma, beta):
    # x: (T, D); gamma/beta: (D,)
    mean = jnp.mean(x, axis=-1, keepdims=True)
    var = jnp.mean((x - mean) ** 2, axis=-1, keepdims=True)
    inv = lax.rsqrt(var + LN_EPS)
    return (x - mean) * inv * gamma[None, :] + beta[None, :]


def encoder_layer_kernel(x_ref, mask_ref,
                         wq_ref, wk_ref, wv_ref, wo_ref,
                         g1_ref, b1_ref,
                         w1_ref, w2_ref,
                         g2_ref, b2_ref,
                         out_ref):
    # x_ref: (B*S, D) f32; mask_ref: (B, S, S) f32
    # wq/wk/wv_ref: (N_HEAD, D, D_K) bf16; wo_ref: (N_HEAD, D_K, D) bf16
    # w1_ref: (D, D_FFN) bf16; w2_ref: (D_FFN, D) bf16; ln params: (1, D) f32
    x = x_ref[...]                        # (B*S, D) f32 (kept for residual)
    x_bf = x.astype(jnp.bfloat16)         # MXU operand
    scale = jnp.float32(1.0 / math.sqrt(D_K))

    # Additive attention-mask bias, hoisted out of the head loop.
    biases = [jnp.where(mask_ref[b] > 0, jnp.float32(-1e9), jnp.float32(0.0))
              for b in range(B)]          # each (S, S) f32

    attn_out = jnp.zeros((B * S, D_MODEL), jnp.float32)
    for h in range(N_HEAD):
        # Per-head projections over ALL tokens: direct dots, no lane slicing.
        qh = jnp.dot(x_bf, wq_ref[h], preferred_element_type=jnp.float32) * scale
        kh = jnp.dot(x_bf, wk_ref[h], preferred_element_type=jnp.float32)
        vh = jnp.dot(x_bf, wv_ref[h], preferred_element_type=jnp.float32)

        ctx_blocks = []
        for b in range(B):                # B=2 static unroll; sublane slices
            lo = b * S
            q_b = qh[lo:lo + S, :]
            k_b = kh[lo:lo + S, :]
            v_b = vh[lo:lo + S, :]
            s = jnp.dot(q_b, k_b.T, preferred_element_type=jnp.float32)
            s = s + biases[b]
            m = jnp.max(s, axis=-1, keepdims=True)
            p = jnp.exp(s - m)
            denom = jnp.sum(p, axis=-1, keepdims=True)
            attn = p * pl.reciprocal(denom, approx=True)
            ctx_blocks.append(
                jnp.dot(attn, v_b, preferred_element_type=jnp.float32))
        ctx_h = jnp.concatenate(ctx_blocks, axis=0)   # (B*S, d_k) sublane concat

        # Output projection: accumulate this head's contribution through W_O[h]
        # (replaces lane-concat of heads + one big ctx @ W_O).
        attn_out = attn_out + jnp.dot(
            ctx_h.astype(jnp.bfloat16), wo_ref[h],
            preferred_element_type=jnp.float32)

    # Residual + LayerNorm 1 (f32).
    h1 = _layer_norm(attn_out + x, g1_ref[0], b1_ref[0])

    # Position-wise FFN (Linear -> ReLU -> Linear) + residual + LayerNorm 2.
    ffn = jnp.dot(h1.astype(jnp.bfloat16), w1_ref[...],
                  preferred_element_type=jnp.float32)
    ffn = jnp.maximum(ffn, 0.0)
    ffn = jnp.dot(ffn.astype(jnp.bfloat16), w2_ref[...],
                  preferred_element_type=jnp.float32)
    h2 = _layer_norm(ffn + h1, g2_ref[0], b2_ref[0])

    out_ref[...] = h2


@jax.jit
def encoder_layer(x, mask, params):
    wq, wk, wv, wo, g1, b1, w1, w2, g2, b2 = params

    # Pre-split projection weights per head so the kernel indexes the leading
    # axis (free) instead of lane-slicing computed activations; cast matmul
    # weights to bf16 (half the weight DMA, bf16 MXU fast path on v6e/v7x).
    wq_h = wq.reshape(D_MODEL, N_HEAD, D_K).transpose(1, 0, 2).astype(jnp.bfloat16)
    wk_h = wk.reshape(D_MODEL, N_HEAD, D_K).transpose(1, 0, 2).astype(jnp.bfloat16)
    wv_h = wv.reshape(D_MODEL, N_HEAD, D_K).transpose(1, 0, 2).astype(jnp.bfloat16)
    wo_h = wo.reshape(N_HEAD, D_K, D_MODEL).astype(jnp.bfloat16)
    w1_b = w1.astype(jnp.bfloat16)
    w2_b = w2.astype(jnp.bfloat16)

    x_flat = x.reshape(B * S, D_MODEL)    # flatten batch for one-shot matmuls

    # No grid: the whole problem (< 40 KB resident) fits VMEM trivially, so
    # every operand is a whole-array VMEM block and the kernel runs exactly
    # once — no per-grid-step overhead, no tiny double-buffered DMAs.
    # TODO(synk): on v7x (2 TensorCores) a grid=(B,) variant with
    # dimension_semantics=("parallel",) could shard the batch across cores.
    out_flat = pl.pallas_call(
        encoder_layer_kernel,
        out_shape=jax.ShapeDtypeStruct((B * S, D_MODEL), jnp.float32),
    )(x_flat, mask, wq_h, wk_h, wv_h, wo_h, g1, b1, w1_b, w2_b, g2, b2)

    return out_flat.reshape(B, S, D_MODEL)


def encoder_layer_ref(x, mask, params):
    """Pure-JAX (f32) reference for correctness check."""
    wq, wk, wv, wo, g1, b1, w1, w2, g2, b2 = params

    def ln(z, g, b):
        m = jnp.mean(z, -1, keepdims=True)
        v = jnp.mean((z - m) ** 2, -1, keepdims=True)
        return (z - m) * lax.rsqrt(v + LN_EPS) * g + b

    q = (x @ wq).reshape(B, S, N_HEAD, D_K).transpose(0, 2, 1, 3)
    k = (x @ wk).reshape(B, S, N_HEAD, D_K).transpose(0, 2, 1, 3)
    v = (x @ wv).reshape(B, S, N_HEAD, D_K).transpose(0, 2, 1, 3)
    scores = jnp.einsum("bhqd,bhkd->bhqk", q, k) / math.sqrt(D_K)
    scores = jnp.where(mask[:, None, :, :] > 0, -1e9, scores)
    attn = jax.nn.softmax(scores, axis=-1)
    ctx = jnp.einsum("bhqk,bhkd->bhqd", attn, v)
    ctx = ctx.transpose(0, 2, 1, 3).reshape(B, S, D_MODEL)
    h1 = ln(ctx @ wo + x, g1[0], b1[0])
    ff = jnp.maximum(h1 @ w1, 0.0) @ w2
    return ln(ff + h1, g2[0], b2[0])


if __name__ == "__main__":
    key = jax.random.PRNGKey(0)
    ks = jax.random.split(key, 10)

    x = jax.random.normal(ks[0], (B, S, D_MODEL), dtype=jnp.float32)
    # Binary attention mask (nonzero => position is masked out).
    mask = (jax.random.uniform(ks[1], (B, S, S)) > 0.8).astype(jnp.float32)

    def init_w(k, shape, fan_in):
        return (jax.random.normal(k, shape, dtype=jnp.float32)
                / math.sqrt(fan_in))

    params = (
        init_w(ks[2], (D_MODEL, D_MODEL), D_MODEL),  # W_Q
        init_w(ks[3], (D_MODEL, D_MODEL), D_MODEL),  # W_K
        init_w(ks[4], (D_MODEL, D_MODEL), D_MODEL),  # W_V
        init_w(ks[5], (D_MODEL, D_MODEL), D_MODEL),  # W_O
        jnp.ones((1, D_MODEL), jnp.float32),          # ln1 gamma
        jnp.zeros((1, D_MODEL), jnp.float32),         # ln1 beta
        init_w(ks[6], (D_MODEL, D_FFN), D_MODEL),     # ffn W1
        init_w(ks[7], (D_FFN, D_MODEL), D_FFN),       # ffn W2
        jnp.ones((1, D_MODEL), jnp.float32),          # ln2 gamma
        jnp.zeros((1, D_MODEL), jnp.float32),         # ln2 beta
    )

    out = encoder_layer(x, mask, params)
    jax.block_until_ready(out)

    ref = encoder_layer_ref(x, mask, params)
    assert out.shape == (B, S, D_MODEL)
    # bf16 MXU operands + approximate softmax reciprocal (per the performance
    # review) introduce a few bf16-ulps of drift vs. the f32 reference, so the
    # tolerance is looser than the previous all-f32 version's 1e-4.
    assert jnp.allclose(out, ref, atol=5e-2, rtol=5e-2), "mismatch vs reference"

    print("KERNEL_OK")
</pallas_src>

<mosaic_0001>
module attributes {stable_mosaic.version = 11 : i64} {
  func.func @encoder_layer_kernel(%arg0: memref<16x32xf32, #tpu.memory_space<vmem>>, %arg1: memref<2x8x8xf32, #tpu.memory_space<vmem>>, %arg2: memref<4x32x8xbf16, #tpu.memory_space<vmem>>, %arg3: memref<4x32x8xbf16, #tpu.memory_space<vmem>>, %arg4: memref<4x32x8xbf16, #tpu.memory_space<vmem>>, %arg5: memref<4x8x32xbf16, #tpu.memory_space<vmem>>, %arg6: memref<1x32xf32, #tpu.memory_space<vmem>>, %arg7: memref<1x32xf32, #tpu.memory_space<vmem>>, %arg8: memref<32x64xbf16, #tpu.memory_space<vmem>>, %arg9: memref<64x32xbf16, #tpu.memory_space<vmem>>, %arg10: memref<1x32xf32, #tpu.memory_space<vmem>>, %arg11: memref<1x32xf32, #tpu.memory_space<vmem>>, %arg12: memref<16x32xf32, #tpu.memory_space<vmem>>) attributes {dimension_semantics = [], scalar_prefetch = 0 : i64, scratch_operands = 0 : i64, tpu.core_type = #tpu.core_type<tc>} {
    %c0 = arith.constant 0 : index
    %c0_0 = arith.constant 0 : index
    %0 = vector.load %arg0[%c0, %c0_0] : memref<16x32xf32, #tpu.memory_space<vmem>>, vector<16x32xf32>
    %1 = arith.truncf %0 : vector<16x32xf32> to vector<16x32xbf16>
    %c0_1 = arith.constant 0 : index
    %c0_2 = arith.constant 0 : index
    %c0_3 = arith.constant 0 : index
    %2 = vector.load %arg1[%c0_1, %c0_2, %c0_3] : memref<2x8x8xf32, #tpu.memory_space<vmem>>, vector<1x8x8xf32>
    %3 = vector.shape_cast %2 : vector<1x8x8xf32> to vector<8x8xf32>
    %cst = arith.constant 0.000000e+00 : f32
    %4 = vector.broadcast %cst : f32 to vector<8x8xf32>
    %5 = arith.cmpf ogt, %3, %4 : vector<8x8xf32>
    %cst_4 = arith.constant -1.000000e+09 : f32
    %cst_5 = arith.constant 0.000000e+00 : f32
    %6 = vector.broadcast %cst_4 : f32 to vector<8x8xf32>
    %7 = vector.broadcast %cst_5 : f32 to vector<8x8xf32>
    %8 = arith.select %5, %6, %7 : vector<8x8xi1>, vector<8x8xf32>
    %c1 = arith.constant 1 : index
    %c0_6 = arith.constant 0 : index
    %c0_7 = arith.constant 0 : index
    %9 = vector.load %arg1[%c1, %c0_6, %c0_7] : memref<2x8x8xf32, #tpu.memory_space<vmem>>, vector<1x8x8xf32>
    %10 = vector.shape_cast %9 : vector<1x8x8xf32> to vector<8x8xf32>
    %cst_8 = arith.constant 0.000000e+00 : f32
    %11 = vector.broadcast %cst_8 : f32 to vector<8x8xf32>
    %12 = arith.cmpf ogt, %10, %11 : vector<8x8xf32>
    %cst_9 = arith.constant -1.000000e+09 : f32
    %cst_10 = arith.constant 0.000000e+00 : f32
    %13 = vector.broadcast %cst_9 : f32 to vector<8x8xf32>
    %14 = vector.broadcast %cst_10 : f32 to vector<8x8xf32>
    %15 = arith.select %12, %13, %14 : vector<8x8xi1>, vector<8x8xf32>
    %cst_11 = arith.constant 0.000000e+00 : f32
    %16 = vector.broadcast %cst_11 : f32 to vector<16x32xf32>
    %c0_12 = arith.constant 0 : index
    %c0_13 = arith.constant 0 : index
    %c0_14 = arith.constant 0 : index
    %17 = vector.load %arg2[%c0_12, %c0_13, %c0_14] : memref<4x32x8xbf16, #tpu.memory_space<vmem>>, vector<1x32x8xbf16>
    %18 = vector.shape_cast %17 : vector<1x32x8xbf16> to vector<32x8xbf16>
    %cst_15 = arith.constant dense<0.000000e+00> : vector<16x8xf32>
    %19 = tpu.matmul %1, %18, %cst_15 {dimension_numbers = #tpu.dot_dimension_numbers<[1], [0], [0], [1], [0, 0, 1, 1], [], []>} : vector<16x32xbf16>, vector<32x8xbf16>, vector<16x8xf32> -> vector<16x8xf32>
    %cst_16 = arith.constant 0.353553385 : f32
    %20 = vector.broadcast %cst_16 : f32 to vector<16x8xf32>
    %21 = arith.mulf %19, %20 : vector<16x8xf32>
    %c0_17 = arith.constant 0 : index
    %c0_18 = arith.constant 0 : index
    %c0_19 = arith.constant 0 : index
    %22 = vector.load %arg3[%c0_17, %c0_18, %c0_19] : memref<4x32x8xbf16, #tpu.memory_space<vmem>>, vector<1x32x8xbf16>
    %23 = vector.shape_cast %22 : vector<1x32x8xbf16> to vector<32x8xbf16>
    %cst_20 = arith.constant dense<0.000000e+00> : vector<16x8xf32>
    %24 = tpu.matmul %1, %23, %cst_20 {dimension_numbers = #tpu.dot_dimension_numbers<[1], [0], [0], [1], [0, 0, 1, 1], [], []>} : vector<16x32xbf16>, vector<32x8xbf16>, vector<16x8xf32> -> vector<16x8xf32>
    %c0_21 = arith.constant 0 : index
    %c0_22 = arith.constant 0 : index
    %c0_23 = arith.constant 0 : index
    %25 = vector.load %arg4[%c0_21, %c0_22, %c0_23] : memref<4x32x8xbf16, #tpu.memory_space<vmem>>, vector<1x32x8xbf16>
    %26 = vector.shape_cast %25 : vector<1x32x8xbf16> to vector<32x8xbf16>
    %cst_24 = arith.constant dense<0.000000e+00> : vector<16x8xf32>
    %27 = tpu.matmul %1, %26, %cst_24 {dimension_numbers = #tpu.dot_dimension_numbers<[1], [0], [0], [1], [0, 0, 1, 1], [], []>} : vector<16x32xbf16>, vector<32x8xbf16>, vector<16x8xf32> -> vector<16x8xf32>
    %28 = vector.extract_strided_slice %21 {offsets = [0, 0], sizes = [8, 8], strides = [1, 1]} : vector<16x8xf32> to vector<8x8xf32>
    %29 = vector.extract_strided_slice %24 {offsets = [0, 0], sizes = [8, 8], strides = [1, 1]} : vector<16x8xf32> to vector<8x8xf32>
    %30 = vector.extract_strided_slice %27 {offsets = [0, 0], sizes = [8, 8], strides = [1, 1]} : vector<16x8xf32> to vector<8x8xf32>
    %31 = tpu.transpose %29, [1, 0] : vector<8x8xf32> -> vector<8x8xf32>
    %cst_25 = arith.constant dense<0.000000e+00> : vector<8x8xf32>
    %32 = tpu.matmul %28, %31, %cst_25 {dimension_numbers = #tpu.dot_dimension_numbers<[1], [0], [0], [1], [0, 0, 1, 1], [], []>} : vector<8x8xf32>, vector<8x8xf32>, vector<8x8xf32> -> vector<8x8xf32>
    %33 = arith.addf %32, %8 : vector<8x8xf32>
    %cst_26 = arith.constant dense<0xFF800000> : vector<8xf32>
    %34 = vector.multi_reduction <maximumf>, %33, %cst_26 [1] : vector<8x8xf32> to vector<8xf32>
    %35 = vector.shape_cast %34 : vector<8xf32> to vector<8x1xf32>
    %36 = vector.broadcast %35 : vector<8x1xf32> to vector<8x8xf32>
    %37 = arith.subf %33, %36 : vector<8x8xf32>
    %38 = math.exp %37 : vector<8x8xf32>
    %cst_27 = arith.constant dense<0.000000e+00> : vector<8xf32>
    %39 = vector.multi_reduction <add>, %38, %cst_27 [1] : vector<8x8xf32> to vector<8xf32>
    %40 = vector.shape_cast %39 : vector<8xf32> to vector<8x1xf32>
    %41 = tpu.reciprocal %40 {approx = true} : vector<8x1xf32> -> vector<8x1xf32>
    %42 = vector.broadcast %41 : vector<8x1xf32> to vector<8x8xf32>
    %43 = arith.mulf %38, %42 : vector<8x8xf32>
    %cst_28 = arith.constant dense<0.000000e+00> : vector<8x8xf32>
    %44 = tpu.matmul %43, %30, %cst_28 {dimension_numbers = #tpu.dot_dimension_numbers<[1], [0], [0], [1], [0, 0, 1, 1], [], []>} : vector<8x8xf32>, vector<8x8xf32>, vector<8x8xf32> -> vector<8x8xf32>
    %45 = vector.extract_strided_slice %21 {offsets = [8, 0], sizes = [8, 8], strides = [1, 1]} : vector<16x8xf32> to vector<8x8xf32>
    %46 = vector.extract_strided_slice %24 {offsets = [8, 0], sizes = [8, 8], strides = [1, 1]} : vector<16x8xf32> to vector<8x8xf32>
    %47 = vector.extract_strided_slice %27 {offsets = [8, 0], sizes = [8, 8], strides = [1, 1]} : vector<16x8xf32> to vector<8x8xf32>
    %48 = tpu.transpose %46, [1, 0] : vector<8x8xf32> -> vector<8x8xf32>
    %cst_29 = arith.constant dense<0.000000e+00> : vector<8x8xf32>
    %49 = tpu.matmul %45, %48, %cst_29 {dimension_numbers = #tpu.dot_dimension_numbers<[1], [0], [0], [1], [0, 0, 1, 1], [], []>} : vector<8x8xf32>, vector<8x8xf32>, vector<8x8xf32> -> vector<8x8xf32>
    %50 = arith.addf %49, %15 : vector<8x8xf32>
    %cst_30 = arith.constant dense<0xFF800000> : vector<8xf32>
    %51 = vector.multi_reduction <maximumf>, %50, %cst_30 [1] : vector<8x8xf32> to vector<8xf32>
    %52 = vector.shape_cast %51 : vector<8xf32> to vector<8x1xf32>
    %53 = vector.broadcast %52 : vector<8x1xf32> to vector<8x8xf32>
    %54 = arith.subf %50, %53 : vector<8x8xf32>
    %55 = math.exp %54 : vector<8x8xf32>
    %cst_31 = arith.constant dense<0.000000e+00> : vector<8xf32>
    %56 = vector.multi_reduction <add>, %55, %cst_31 [1] : vector<8x8xf32> to vector<8xf32>
    %57 = vector.shape_cast %56 : vector<8xf32> to vector<8x1xf32>
    %58 = tpu.reciprocal %57 {approx = true} : vector<8x1xf32> -> vector<8x1xf32>
    %59 = vector.broadcast %58 : vector<8x1xf32> to vector<8x8xf32>
    %60 = arith.mulf %55, %59 : vector<8x8xf32>
    %cst_32 = arith.constant dense<0.000000e+00> : vector<8x8xf32>
    %61 = tpu.matmul %60, %47, %cst_32 {dimension_numbers = #tpu.dot_dimension_numbers<[1], [0], [0], [1], [0, 0, 1, 1], [], []>} : vector<8x8xf32>, vector<8x8xf32>, vector<8x8xf32> -> vector<8x8xf32>
    %62 = tpu.concatenate %44, %61 in 0 : vector<8x8xf32>, vector<8x8xf32> -> vector<16x8xf32>
    %63 = arith.truncf %62 : vector<16x8xf32> to vector<16x8xbf16>
    %c0_33 = arith.constant 0 : index
    %c0_34 = arith.constant 0 : index
    %c0_35 = arith.constant 0 : index
    %64 = vector.load %arg5[%c0_33, %c0_34, %c0_35] : memref<4x8x32xbf16, #tpu.memory_space<vmem>>, vector<1x8x32xbf16>
    %65 = vector.shape_cast %64 : vector<1x8x32xbf16> to vector<8x32xbf16>
    %cst_36 = arith.constant dense<0.000000e+00> : vector<16x32xf32>
    %66 = tpu.matmul %63, %65, %cst_36 {dimension_numbers = #tpu.dot_dimension_numbers<[1], [0], [0], [1], [0, 0, 1, 1], [], []>} : vector<16x8xbf16>, vector<8x32xbf16>, vector<16x32xf32> -> vector<16x32xf32>
    %67 = arith.addf %16, %66 : vector<16x32xf32>
    %c1_37 = arith.constant 1 : index
    %c0_38 = arith.constant 0 : index
    %c0_39 = arith.constant 0 : index
    %68 = vector.load %arg2[%c1_37, %c0_38, %c0_39] : memref<4x32x8xbf16, #tpu.memory_space<vmem>>, vector<1x32x8xbf16>
    %69 = vector.shape_cast %68 : vector<1x32x8xbf16> to vector<32x8xbf16>
    %cst_40 = arith.constant dense<0.000000e+00> : vector<16x8xf32>
    %70 = tpu.matmul %1, %69, %cst_40 {dimension_numbers = #tpu.dot_dimension_numbers<[1], [0], [0], [1], [0, 0, 1, 1], [], []>} : vector<16x32xbf16>, vector<32x8xbf16>, vector<16x8xf32> -> vector<16x8xf32>
    %cst_41 = arith.constant 0.353553385 : f32
    %71 = vector.broadcast %cst_41 : f32 to vector<16x8xf32>
    %72 = arith.mulf %70, %71 : vector<16x8xf32>
    %c1_42 = arith.constant 1 : index
    %c0_43 = arith.constant 0 : index
    %c0_44 = arith.constant 0 : index
    %73 = vector.load %arg3[%c1_42, %c0_43, %c0_44] : memref<4x32x8xbf16, #tpu.memory_space<vmem>>, vector<1x32x8xbf16>
    %74 = vector.shape_cast %73 : vector<1x32x8xbf16> to vector<32x8xbf16>
    %cst_45 = arith.constant dense<0.000000e+00> : vector<16x8xf32>
    %75 = tpu.matmul %1, %74, %cst_45 {dimension_numbers = #tpu.dot_dimension_numbers<[1], [0], [0], [1], [0, 0, 1, 1], [], []>} : vector<16x32xbf16>, vector<32x8xbf16>, vector<16x8xf32> -> vector<16x8xf32>
    %c1_46 = arith.constant 1 : index
    %c0_47 = arith.constant 0 : index
    %c0_48 = arith.constant 0 : index
    %76 = vector.load %arg4[%c1_46, %c0_47, %c0_48] : memref<4x32x8xbf16, #tpu.memory_space<vmem>>, vector<1x32x8xbf16>
    %77 = vector.shape_cast %76 : vector<1x32x8xbf16> to vector<32x8xbf16>
    %cst_49 = arith.constant dense<0.000000e+00> : vector<16x8xf32>
    %78 = tpu.matmul %1, %77, %cst_49 {dimension_numbers = #tpu.dot_dimension_numbers<[1], [0], [0], [1], [0, 0, 1, 1], [], []>} : vector<16x32xbf16>, vector<32x8xbf16>, vector<16x8xf32> -> vector<16x8xf32>
    %79 = vector.extract_strided_slice %72 {offsets = [0, 0], sizes = [8, 8], strides = [1, 1]} : vector<16x8xf32> to vector<8x8xf32>
    %80 = vector.extract_strided_slice %75 {offsets = [0, 0], sizes = [8, 8], strides = [1, 1]} : vector<16x8xf32> to vector<8x8xf32>
    %81 = vector.extract_strided_slice %78 {offsets = [0, 0], sizes = [8, 8], strides = [1, 1]} : vector<16x8xf32> to vector<8x8xf32>
    %82 = tpu.transpose %80, [1, 0] : vector<8x8xf32> -> vector<8x8xf32>
    %cst_50 = arith.constant dense<0.000000e+00> : vector<8x8xf32>
    %83 = tpu.matmul %79, %82, %cst_50 {dimension_numbers = #tpu.dot_dimension_numbers<[1], [0], [0], [1], [0, 0, 1, 1], [], []>} : vector<8x8xf32>, vector<8x8xf32>, vector<8x8xf32> -> vector<8x8xf32>
    %84 = arith.addf %83, %8 : vector<8x8xf32>
    %cst_51 = arith.constant dense<0xFF800000> : vector<8xf32>
    %85 = vector.multi_reduction <maximumf>, %84, %cst_51 [1] : vector<8x8xf32> to vector<8xf32>
    %86 = vector.shape_cast %85 : vector<8xf32> to vector<8x1xf32>
    %87 = vector.broadcast %86 : vector<8x1xf32> to vector<8x8xf32>
    %88 = arith.subf %84, %87 : vector<8x8xf32>
    %89 = math.exp %88 : vector<8x8xf32>
    %cst_52 = arith.constant dense<0.000000e+00> : vector<8xf32>
    %90 = vector.multi_reduction <add>, %89, %cst_52 [1] : vector<8x8xf32> to vector<8xf32>
    %91 = vector.shape_cast %90 : vector<8xf32> to vector<8x1xf32>
    %92 = tpu.reciprocal %91 {approx = true} : vector<8x1xf32> -> vector<8x1xf32>
    %93 = vector.broadcast %92 : vector<8x1xf32> to vector<8x8xf32>
    %94 = arith.mulf %89, %93 : vector<8x8xf32>
    %cst_53 = arith.constant dense<0.000000e+00> : vector<8x8xf32>
    %95 = tpu.matmul %94, %81, %cst_53 {dimension_numbers = #tpu.dot_dimension_numbers<[1], [0], [0], [1], [0, 0, 1, 1], [], []>} : vector<8x8xf32>, vector<8x8xf32>, vector<8x8xf32> -> vector<8x8xf32>
    %96 = vector.extract_strided_slice %72 {offsets = [8, 0], sizes = [8, 8], strides = [1, 1]} : vector<16x8xf32> to vector<8x8xf32>
    %97 = vector.extract_strided_slice %75 {offsets = [8, 0], sizes = [8, 8], strides = [1, 1]} : vector<16x8xf32> to vector<8x8xf32>
    %98 = vector.extract_strided_slice %78 {offsets = [8, 0], sizes = [8, 8], strides = [1, 1]} : vector<16x8xf32> to vector<8x8xf32>
    %99 = tpu.transpose %97, [1, 0] : vector<8x8xf32> -> vector<8x8xf32>
    %cst_54 = arith.constant dense<0.000000e+00> : vector<8x8xf32>
    %100 = tpu.matmul %96, %99, %cst_54 {dimension_numbers = #tpu.dot_dimension_numbers<[1], [0], [0], [1], [0, 0, 1, 1], [], []>} : vector<8x8xf32>, vector<8x8xf32>, vector<8x8xf32> -> vector<8x8xf32>
    %101 = arith.addf %100, %15 : vector<8x8xf32>
    %cst_55 = arith.constant dense<0xFF800000> : vector<8xf32>
    %102 = vector.multi_reduction <maximumf>, %101, %cst_55 [1] : vector<8x8xf32> to vector<8xf32>
    %103 = vector.shape_cast %102 : vector<8xf32> to vector<8x1xf32>
    %104 = vector.broadcast %103 : vector<8x1xf32> to vector<8x8xf32>
    %105 = arith.subf %101, %104 : vector<8x8xf32>
    %106 = math.exp %105 : vector<8x8xf32>
    %cst_56 = arith.constant dense<0.000000e+00> : vector<8xf32>
    %107 = vector.multi_reduction <add>, %106, %cst_56 [1] : vector<8x8xf32> to vector<8xf32>
    %108 = vector.shape_cast %107 : vector<8xf32> to vector<8x1xf32>
    %109 = tpu.reciprocal %108 {approx = true} : vector<8x1xf32> -> vector<8x1xf32>
    %110 = vector.broadcast %109 : vector<8x1xf32> to vector<8x8xf32>
    %111 = arith.mulf %106, %110 : vector<8x8xf32>
    %cst_57 = arith.constant dense<0.000000e+00> : vector<8x8xf32>
    %112 = tpu.matmul %111, %98, %cst_57 {dimension_numbers = #tpu.dot_dimension_numbers<[1], [0], [0], [1], [0, 0, 1, 1], [], []>} : vector<8x8xf32>, vector<8x8xf32>, vector<8x8xf32> -> vector<8x8xf32>
    %113 = tpu.concatenate %95, %112 in 0 : vector<8x8xf32>, vector<8x8xf32> -> vector<16x8xf32>
    %114 = arith.truncf %113 : vector<16x8xf32> to vector<16x8xbf16>
    %c1_58 = arith.constant 1 : index
    %c0_59 = arith.constant 0 : index
    %c0_60 = arith.constant 0 : index
    %115 = vector.load %arg5[%c1_58, %c0_59, %c0_60] : memref<4x8x32xbf16, #tpu.memory_space<vmem>>, vector<1x8x32xbf16>
    %116 = vector.shape_cast %115 : vector<1x8x32xbf16> to vector<8x32xbf16>
    %cst_61 = arith.constant dense<0.000000e+00> : vector<16x32xf32>
    %117 = tpu.matmul %114, %116, %cst_61 {dimension_numbers = #tpu.dot_dimension_numbers<[1], [0], [0], [1], [0, 0, 1, 1], [], []>} : vector<16x8xbf16>, vector<8x32xbf16>, vector<16x32xf32> -> vector<16x32xf32>
    %118 = arith.addf %67, %117 : vector<16x32xf32>
    %c2 = arith.constant 2 : index
    %c0_62 = arith.constant 0 : index
    %c0_63 = arith.constant 0 : index
    %119 = vector.load %arg2[%c2, %c0_62, %c0_63] : memref<4x32x8xbf16, #tpu.memory_space<vmem>>, vector<1x32x8xbf16>
    %120 = vector.shape_cast %119 : vector<1x32x8xbf16> to vector<32x8xbf16>
    %cst_64 = arith.constant dense<0.000000e+00> : vector<16x8xf32>
    %121 = tpu.matmul %1, %120, %cst_64 {dimension_numbers = #tpu.dot_dimension_numbers<[1], [0], [0], [1], [0, 0, 1, 1], [], []>} : vector<16x32xbf16>, vector<32x8xbf16>, vector<16x8xf32> -> vector<16x8xf32>
    %cst_65 = arith.constant 0.353553385 : f32
    %122 = vector.broadcast %cst_65 : f32 to vector<16x8xf32>
    %123 = arith.mulf %121, %122 : vector<16x8xf32>
    %c2_66 = arith.constant 2 : index
    %c0_67 = arith.constant 0 : index
    %c0_68 = arith.constant 0 : index
    %124 = vector.load %arg3[%c2_66, %c0_67, %c0_68] : memref<4x32x8xbf16, #tpu.memory_space<vmem>>, vector<1x32x8xbf16>
    %125 = vector.shape_cast %124 : vector<1x32x8xbf16> to vector<32x8xbf16>
    %cst_69 = arith.constant dense<0.000000e+00> : vector<16x8xf32>
    %126 = tpu.matmul %1, %125, %cst_69 {dimension_numbers = #tpu.dot_dimension_numbers<[1], [0], [0], [1], [0, 0, 1, 1], [], []>} : vector<16x32xbf16>, vector<32x8xbf16>, vector<16x8xf32> -> vector<16x8xf32>
    %c2_70 = arith.constant 2 : index
    %c0_71 = arith.constant 0 : index
    %c0_72 = arith.constant 0 : index
    %127 = vector.load %arg4[%c2_70, %c0_71, %c0_72] : memref<4x32x8xbf16, #tpu.memory_space<vmem>>, vector<1x32x8xbf16>
    %128 = vector.shape_cast %127 : vector<1x32x8xbf16> to vector<32x8xbf16>
    %cst_73 = arith.constant dense<0.000000e+00> : vector<16x8xf32>
    %129 = tpu.matmul %1, %128, %cst_73 {dimension_numbers = #tpu.dot_dimension_numbers<[1], [0], [0], [1], [0, 0, 1, 1], [], []>} : vector<16x32xbf16>, vector<32x8xbf16>, vector<16x8xf32> -> vector<16x8xf32>
    %130 = vector.extract_strided_slice %123 {offsets = [0, 0], sizes = [8, 8], strides = [1, 1]} : vector<16x8xf32> to vector<8x8xf32>
    %131 = vector.extract_strided_slice %126 {offsets = [0, 0], sizes = [8, 8], strides = [1, 1]} : vector<16x8xf32> to vector<8x8xf32>
    %132 = vector.extract_strided_slice %129 {offsets = [0, 0], sizes = [8, 8], strides = [1, 1]} : vector<16x8xf32> to vector<8x8xf32>
    %133 = tpu.transpose %131, [1, 0] : vector<8x8xf32> -> vector<8x8xf32>
    %cst_74 = arith.constant dense<0.000000e+00> : vector<8x8xf32>
    %134 = tpu.matmul %130, %133, %cst_74 {dimension_numbers = #tpu.dot_dimension_numbers<[1], [0], [0], [1], [0, 0, 1, 1], [], []>} : vector<8x8xf32>, vector<8x8xf32>, vector<8x8xf32> -> vector<8x8xf32>
    %135 = arith.addf %134, %8 : vector<8x8xf32>
    %cst_75 = arith.constant dense<0xFF800000> : vector<8xf32>
    %136 = vector.multi_reduction <maximumf>, %135, %cst_75 [1] : vector<8x8xf32> to vector<8xf32>
    %137 = vector.shape_cast %136 : vector<8xf32> to vector<8x1xf32>
    %138 = vector.broadcast %137 : vector<8x1xf32> to vector<8x8xf32>
    %139 = arith.subf %135, %138 : vector<8x8xf32>
    %140 = math.exp %139 : vector<8x8xf32>
    %cst_76 = arith.constant dense<0.000000e+00> : vector<8xf32>
    %141 = vector.multi_reduction <add>, %140, %cst_76 [1] : vector<8x8xf32> to vector<8xf32>
    %142 = vector.shape_cast %141 : vector<8xf32> to vector<8x1xf32>
    %143 = tpu.reciprocal %142 {approx = true} : vector<8x1xf32> -> vector<8x1xf32>
    %144 = vector.broadcast %143 : vector<8x1xf32> to vector<8x8xf32>
    %145 = arith.mulf %140, %144 : vector<8x8xf32>
    %cst_77 = arith.constant dense<0.000000e+00> : vector<8x8xf32>
    %146 = tpu.matmul %145, %132, %cst_77 {dimension_numbers = #tpu.dot_dimension_numbers<[1], [0], [0], [1], [0, 0, 1, 1], [], []>} : vector<8x8xf32>, vector<8x8xf32>, vector<8x8xf32> -> vector<8x8xf32>
    %147 = vector.extract_strided_slice %123 {offsets = [8, 0], sizes = [8, 8], strides = [1, 1]} : vector<16x8xf32> to vector<8x8xf32>
    %148 = vector.extract_strided_slice %126 {offsets = [8, 0], sizes = [8, 8], strides = [1, 1]} : vector<16x8xf32> to vector<8x8xf32>
    %149 = vector.extract_strided_slice %129 {offsets = [8, 0], sizes = [8, 8], strides = [1, 1]} : vector<16x8xf32> to vector<8x8xf32>
    %150 = tpu.transpose %148, [1, 0] : vector<8x8xf32> -> vector<8x8xf32>
    %cst_78 = arith.constant dense<0.000000e+00> : vector<8x8xf32>
    %151 = tpu.matmul %147, %150, %cst_78 {dimension_numbers = #tpu.dot_dimension_numbers<[1], [0], [0], [1], [0, 0, 1, 1], [], []>} : vector<8x8xf32>, vector<8x8xf32>, vector<8x8xf32> -> vector<8x8xf32>
    %152 = arith.addf %151, %15 : vector<8x8xf32>
    %cst_79 = arith.constant dense<0xFF800000> : vector<8xf32>
    %153 = vector.multi_reduction <maximumf>, %152, %cst_79 [1] : vector<8x8xf32> to vector<8xf32>
    %154 = vector.shape_cast %153 : vector<8xf32> to vector<8x1xf32>
    %155 = vector.broadcast %154 : vector<8x1xf32> to vector<8x8xf32>
    %156 = arith.subf %152, %155 : vector<8x8xf32>
    %157 = math.exp %156 : vector<8x8xf32>
    %cst_80 = arith.constant dense<0.000000e+00> : vector<8xf32>
    %158 = vector.multi_reduction <add>, %157, %cst_80 [1] : vector<8x8xf32> to vector<8xf32>
    %159 = vector.shape_cast %158 : vector<8xf32> to vector<8x1xf32>
    %160 = tpu.reciprocal %159 {approx = true} : vector<8x1xf32> -> vector<8x1xf32>
    %161 = vector.broadcast %160 : vector<8x1xf32> to vector<8x8xf32>
    %162 = arith.mulf %157, %161 : vector<8x8xf32>
    %cst_81 = arith.constant dense<0.000000e+00> : vector<8x8xf32>
    %163 = tpu.matmul %162, %149, %cst_81 {dimension_numbers = #tpu.dot_dimension_numbers<[1], [0], [0], [1], [0, 0, 1, 1], [], []>} : vector<8x8xf32>, vector<8x8xf32>, vector<8x8xf32> -> vector<8x8xf32>
    %164 = tpu.concatenate %146, %163 in 0 : vector<8x8xf32>, vector<8x8xf32> -> vector<16x8xf32>
    %165 = arith.truncf %164 : vector<16x8xf32> to vector<16x8xbf16>
    %c2_82 = arith.constant 2 : index
    %c0_83 = arith.constant 0 : index
    %c0_84 = arith.constant 0 : index
    %166 = vector.load %arg5[%c2_82, %c0_83, %c0_84] : memref<4x8x32xbf16, #tpu.memory_space<vmem>>, vector<1x8x32xbf16>
    %167 = vector.shape_cast %166 : vector<1x8x32xbf16> to vector<8x32xbf16>
    %cst_85 = arith.constant dense<0.000000e+00> : vector<16x32xf32>
    %168 = tpu.matmul %165, %167, %cst_85 {dimension_numbers = #tpu.dot_dimension_numbers<[1], [0], [0], [1], [0, 0, 1, 1], [], []>} : vector<16x8xbf16>, vector<8x32xbf16>, vector<16x32xf32> -> vector<16x32xf32>
    %169 = arith.addf %118, %168 : vector<16x32xf32>
    %c3 = arith.constant 3 : index
    %c0_86 = arith.constant 0 : index
    %c0_87 = arith.constant 0 : index
    %170 = vector.load %arg2[%c3, %c0_86, %c0_87] : memref<4x32x8xbf16, #tpu.memory_space<vmem>>, vector<1x32x8xbf16>
    %171 = vector.shape_cast %170 : vector<1x32x8xbf16> to vector<32x8xbf16>
    %cst_88 = arith.constant dense<0.000000e+00> : vector<16x8xf32>
    %172 = tpu.matmul %1, %171, %cst_88 {dimension_numbers = #tpu.dot_dimension_numbers<[1], [0], [0], [1], [0, 0, 1, 1], [], []>} : vector<16x32xbf16>, vector<32x8xbf16>, vector<16x8xf32> -> vector<16x8xf32>
    %cst_89 = arith.constant 0.353553385 : f32
    %173 = vector.broadcast %cst_89 : f32 to vector<16x8xf32>
    %174 = arith.mulf %172, %173 : vector<16x8xf32>
    %c3_90 = arith.constant 3 : index
    %c0_91 = arith.constant 0 : index
    %c0_92 = arith.constant 0 : index
    %175 = vector.load %arg3[%c3_90, %c0_91, %c0_92] : memref<4x32x8xbf16, #tpu.memory_space<vmem>>, vector<1x32x8xbf16>
    %176 = vector.shape_cast %175 : vector<1x32x8xbf16> to vector<32x8xbf16>
    %cst_93 = arith.constant dense<0.000000e+00> : vector<16x8xf32>
    %177 = tpu.matmul %1, %176, %cst_93 {dimension_numbers = #tpu.dot_dimension_numbers<[1], [0], [0], [1], [0, 0, 1, 1], [], []>} : vector<16x32xbf16>, vector<32x8xbf16>, vector<16x8xf32> -> vector<16x8xf32>
    %c3_94 = arith.constant 3 : index
    %c0_95 = arith.constant 0 : index
    %c0_96 = arith.constant 0 : index
    %178 = vector.load %arg4[%c3_94, %c0_95, %c0_96] : memref<4x32x8xbf16, #tpu.memory_space<vmem>>, vector<1x32x8xbf16>
    %179 = vector.shape_cast %178 : vector<1x32x8xbf16> to vector<32x8xbf16>
    %cst_97 = arith.constant dense<0.000000e+00> : vector<16x8xf32>
    %180 = tpu.matmul %1, %179, %cst_97 {dimension_numbers = #tpu.dot_dimension_numbers<[1], [0], [0], [1], [0, 0, 1, 1], [], []>} : vector<16x32xbf16>, vector<32x8xbf16>, vector<16x8xf32> -> vector<16x8xf32>
    %181 = vector.extract_strided_slice %174 {offsets = [0, 0], sizes = [8, 8], strides = [1, 1]} : vector<16x8xf32> to vector<8x8xf32>
    %182 = vector.extract_strided_slice %177 {offsets = [0, 0], sizes = [8, 8], strides = [1, 1]} : vector<16x8xf32> to vector<8x8xf32>
    %183 = vector.extract_strided_slice %180 {offsets = [0, 0], sizes = [8, 8], strides = [1, 1]} : vector<16x8xf32> to vector<8x8xf32>
    %184 = tpu.transpose %182, [1, 0] : vector<8x8xf32> -> vector<8x8xf32>
    %cst_98 = arith.constant dense<0.000000e+00> : vector<8x8xf32>
    %185 = tpu.matmul %181, %184, %cst_98 {dimension_numbers = #tpu.dot_dimension_numbers<[1], [0], [0], [1], [0, 0, 1, 1], [], []>} : vector<8x8xf32>, vector<8x8xf32>, vector<8x8xf32> -> vector<8x8xf32>
    %186 = arith.addf %185, %8 : vector<8x8xf32>
    %cst_99 = arith.constant dense<0xFF800000> : vector<8xf32>
    %187 = vector.multi_reduction <maximumf>, %186, %cst_99 [1] : vector<8x8xf32> to vector<8xf32>
    %188 = vector.shape_cast %187 : vector<8xf32> to vector<8x1xf32>
    %189 = vector.broadcast %188 : vector<8x1xf32> to vector<8x8xf32>
    %190 = arith.subf %186, %189 : vector<8x8xf32>
    %191 = math.exp %190 : vector<8x8xf32>
    %cst_100 = arith.constant dense<0.000000e+00> : vector<8xf32>
    %192 = vector.multi_reduction <add>, %191, %cst_100 [1] : vector<8x8xf32> to vector<8xf32>
    %193 = vector.shape_cast %192 : vector<8xf32> to vector<8x1xf32>
    %194 = tpu.reciprocal %193 {approx = true} : vector<8x1xf32> -> vector<8x1xf32>
    %195 = vector.broadcast %194 : vector<8x1xf32> to vector<8x8xf32>
    %196 = arith.mulf %191, %195 : vector<8x8xf32>
    %cst_101 = arith.constant dense<0.000000e+00> : vector<8x8xf32>
    %197 = tpu.matmul %196, %183, %cst_101 {dimension_numbers = #tpu.dot_dimension_numbers<[1], [0], [0], [1], [0, 0, 1, 1], [], []>} : vector<8x8xf32>, vector<8x8xf32>, vector<8x8xf32> -> vector<8x8xf32>
    %198 = vector.extract_strided_slice %174 {offsets = [8, 0], sizes = [8, 8], strides = [1, 1]} : vector<16x8xf32> to vector<8x8xf32>
    %199 = vector.extract_strided_slice %177 {offsets = [8, 0], sizes = [8, 8], strides = [1, 1]} : vector<16x8xf32> to vector<8x8xf32>
    %200 = vector.extract_strided_slice %180 {offsets = [8, 0], sizes = [8, 8], strides = [1, 1]} : vector<16x8xf32> to vector<8x8xf32>
    %201 = tpu.transpose %199, [1, 0] : vector<8x8xf32> -> vector<8x8xf32>
    %cst_102 = arith.constant dense<0.000000e+00> : vector<8x8xf32>
    %202 = tpu.matmul %198, %201, %cst_102 {dimension_numbers = #tpu.dot_dimension_numbers<[1], [0], [0], [1], [0, 0, 1, 1], [], []>} : vector<8x8xf32>, vector<8x8xf32>, vector<8x8xf32> -> vector<8x8xf32>
    %203 = arith.addf %202, %15 : vector<8x8xf32>
    %cst_103 = arith.constant dense<0xFF800000> : vector<8xf32>
    %204 = vector.multi_reduction <maximumf>, %203, %cst_103 [1] : vector<8x8xf32> to vector<8xf32>
    %205 = vector.shape_cast %204 : vector<8xf32> to vector<8x1xf32>
    %206 = vector.broadcast %205 : vector<8x1xf32> to vector<8x8xf32>
    %207 = arith.subf %203, %206 : vector<8x8xf32>
    %208 = math.exp %207 : vector<8x8xf32>
    %cst_104 = arith.constant dense<0.000000e+00> : vector<8xf32>
    %209 = vector.multi_reduction <add>, %208, %cst_104 [1] : vector<8x8xf32> to vector<8xf32>
    %210 = vector.shape_cast %209 : vector<8xf32> to vector<8x1xf32>
    %211 = tpu.reciprocal %210 {approx = true} : vector<8x1xf32> -> vector<8x1xf32>
    %212 = vector.broadcast %211 : vector<8x1xf32> to vector<8x8xf32>
    %213 = arith.mulf %208, %212 : vector<8x8xf32>
    %cst_105 = arith.constant dense<0.000000e+00> : vector<8x8xf32>
    %214 = tpu.matmul %213, %200, %cst_105 {dimension_numbers = #tpu.dot_dimension_numbers<[1], [0], [0], [1], [0, 0, 1, 1], [], []>} : vector<8x8xf32>, vector<8x8xf32>, vector<8x8xf32> -> vector<8x8xf32>
    %215 = tpu.concatenate %197, %214 in 0 : vector<8x8xf32>, vector<8x8xf32> -> vector<16x8xf32>
    %216 = arith.truncf %215 : vector<16x8xf32> to vector<16x8xbf16>
    %c3_106 = arith.constant 3 : index
    %c0_107 = arith.constant 0 : index
    %c0_108 = arith.constant 0 : index
    %217 = vector.load %arg5[%c3_106, %c0_107, %c0_108] : memref<4x8x32xbf16, #tpu.memory_space<vmem>>, vector<1x8x32xbf16>
    %218 = vector.shape_cast %217 : vector<1x8x32xbf16> to vector<8x32xbf16>
    %cst_109 = arith.constant dense<0.000000e+00> : vector<16x32xf32>
    %219 = tpu.matmul %216, %218, %cst_109 {dimension_numbers = #tpu.dot_dimension_numbers<[1], [0], [0], [1], [0, 0, 1, 1], [], []>} : vector<16x8xbf16>, vector<8x32xbf16>, vector<16x32xf32> -> vector<16x32xf32>
    %220 = arith.addf %169, %219 : vector<16x32xf32>
    %221 = arith.addf %220, %0 : vector<16x32xf32>
    %c0_110 = arith.constant 0 : index
    %c0_111 = arith.constant 0 : index
    %222 = vector.load %arg6[%c0_110, %c0_111] : memref<1x32xf32, #tpu.memory_space<vmem>>, vector<1x32xf32>
    %223 = vector.shape_cast %222 : vector<1x32xf32> to vector<32xf32>
    %c0_112 = arith.constant 0 : index
    %c0_113 = arith.constant 0 : index
    %224 = vector.load %arg7[%c0_112, %c0_113] : memref<1x32xf32, #tpu.memory_space<vmem>>, vector<1x32xf32>
    %225 = vector.shape_cast %224 : vector<1x32xf32> to vector<32xf32>
    %cst_114 = arith.constant dense<0.000000e+00> : vector<16xf32>
    %226 = vector.multi_reduction <add>, %221, %cst_114 [1] : vector<16x32xf32> to vector<16xf32>
    %227 = vector.shape_cast %226 : vector<16xf32> to vector<16x1xf32>
    %cst_115 = arith.constant 3.200000e+01 : f32
    %228 = vector.broadcast %cst_115 : f32 to vector<16x1xf32>
    %229 = arith.divf %227, %228 : vector<16x1xf32>
    %230 = vector.broadcast %229 : vector<16x1xf32> to vector<16x32xf32>
    %231 = arith.subf %221, %230 : vector<16x32xf32>
    %232 = arith.mulf %231, %231 : vector<16x32xf32>
    %cst_116 = arith.constant dense<0.000000e+00> : vector<16xf32>
    %233 = vector.multi_reduction <add>, %232, %cst_116 [1] : vector<16x32xf32> to vector<16xf32>
    %234 = vector.shape_cast %233 : vector<16xf32> to vector<16x1xf32>
    %cst_117 = arith.constant 3.200000e+01 : f32
    %235 = vector.broadcast %cst_117 : f32 to vector<16x1xf32>
    %236 = arith.divf %234, %235 : vector<16x1xf32>
    %cst_118 = arith.constant 9.99999974E-6 : f32
    %237 = vector.broadcast %cst_118 : f32 to vector<16x1xf32>
    %238 = arith.addf %236, %237 : vector<16x1xf32>
    %239 = math.rsqrt %238 : vector<16x1xf32>
    %240 = vector.broadcast %229 : vector<16x1xf32> to vector<16x32xf32>
    %241 = arith.subf %221, %240 : vector<16x32xf32>
    %242 = vector.broadcast %239 : vector<16x1xf32> to vector<16x32xf32>
    %243 = arith.mulf %241, %242 : vector<16x32xf32>
    %244 = vector.shape_cast %223 : vector<32xf32> to vector<1x32xf32>
    %245 = vector.broadcast %244 : vector<1x32xf32> to vector<16x32xf32>
    %246 = arith.mulf %243, %245 : vector<16x32xf32>
    %247 = vector.shape_cast %225 : vector<32xf32> to vector<1x32xf32>
    %248 = vector.broadcast %247 : vector<1x32xf32> to vector<16x32xf32>
    %249 = arith.addf %246, %248 : vector<16x32xf32>
    %250 = arith.truncf %249 : vector<16x32xf32> to vector<16x32xbf16>
    %c0_119 = arith.constant 0 : index
    %c0_120 = arith.constant 0 : index
    %251 = vector.load %arg8[%c0_119, %c0_120] : memref<32x64xbf16, #tpu.memory_space<vmem>>, vector<32x64xbf16>
    %cst_121 = arith.constant dense<0.000000e+00> : vector<16x64xf32>
    %252 = tpu.matmul %250, %251, %cst_121 {dimension_numbers = #tpu.dot_dimension_numbers<[1], [0], [0], [1], [0, 0, 1, 1], [], []>} : vector<16x32xbf16>, vector<32x64xbf16>, vector<16x64xf32> -> vector<16x64xf32>
    %cst_122 = arith.constant 0.000000e+00 : f32
    %253 = vector.broadcast %cst_122 : f32 to vector<16x64xf32>
    %254 = arith.maximumf %252, %253 : vector<16x64xf32>
    %255 = arith.truncf %254 : vector<16x64xf32> to vector<16x64xbf16>
    %c0_123 = arith.constant 0 : index
    %c0_124 = arith.constant 0 : index
    %256 = vector.load %arg9[%c0_123, %c0_124] : memref<64x32xbf16, #tpu.memory_space<vmem>>, vector<64x32xbf16>
    %cst_125 = arith.constant dense<0.000000e+00> : vector<16x32xf32>
    %257 = tpu.matmul %255, %256, %cst_125 {dimension_numbers = #tpu.dot_dimension_numbers<[1], [0], [0], [1], [0, 0, 1, 1], [], []>} : vector<16x64xbf16>, vector<64x32xbf16>, vector<16x32xf32> -> vector<16x32xf32>
    %258 = arith.addf %257, %249 : vector<16x32xf32>
    %c0_126 = arith.constant 0 : index
    %c0_127 = arith.constant 0 : index
    %259 = vector.load %arg10[%c0_126, %c0_127] : memref<1x32xf32, #tpu.memory_space<vmem>>, vector<1x32xf32>
    %260 = vector.shape_cast %259 : vector<1x32xf32> to vector<32xf32>
    %c0_128 = arith.constant 0 : index
    %c0_129 = arith.constant 0 : index
    %261 = vector.load %arg11[%c0_128, %c0_129] : memref<1x32xf32, #tpu.memory_space<vmem>>, vector<1x32xf32>
    %262 = vector.shape_cast %261 : vector<1x32xf32> to vector<32xf32>
    %cst_130 = arith.constant dense<0.000000e+00> : vector<16xf32>
    %263 = vector.multi_reduction <add>, %258, %cst_130 [1] : vector<16x32xf32> to vector<16xf32>
    %264 = vector.shape_cast %263 : vector<16xf32> to vector<16x1xf32>
    %cst_131 = arith.constant 3.200000e+01 : f32
    %265 = vector.broadcast %cst_131 : f32 to vector<16x1xf32>
    %266 = arith.divf %264, %265 : vector<16x1xf32>
    %267 = vector.broadcast %266 : vector<16x1xf32> to vector<16x32xf32>
    %268 = arith.subf %258, %267 : vector<16x32xf32>
    %269 = arith.mulf %268, %268 : vector<16x32xf32>
    %cst_132 = arith.constant dense<0.000000e+00> : vector<16xf32>
    %270 = vector.multi_reduction <add>, %269, %cst_132 [1] : vector<16x32xf32> to vector<16xf32>
    %271 = vector.shape_cast %270 : vector<16xf32> to vector<16x1xf32>
    %cst_133 = arith.constant 3.200000e+01 : f32
    %272 = vector.broadcast %cst_133 : f32 to vector<16x1xf32>
    %273 = arith.divf %271, %272 : vector<16x1xf32>
    %cst_134 = arith.constant 9.99999974E-6 : f32
    %274 = vector.broadcast %cst_134 : f32 to vector<16x1xf32>
    %275 = arith.addf %273, %274 : vector<16x1xf32>
    %276 = math.rsqrt %275 : vector<16x1xf32>
    %277 = vector.broadcast %266 : vector<16x1xf32> to vector<16x32xf32>
    %278 = arith.subf %258, %277 : vector<16x32xf32>
    %279 = vector.broadcast %276 : vector<16x1xf32> to vector<16x32xf32>
    %280 = arith.mulf %278, %279 : vector<16x32xf32>
    %281 = vector.shape_cast %260 : vector<32xf32> to vector<1x32xf32>
    %282 = vector.broadcast %281 : vector<1x32xf32> to vector<16x32xf32>
    %283 = arith.mulf %280, %282 : vector<16x32xf32>
    %284 = vector.shape_cast %262 : vector<32xf32> to vector<1x32xf32>
    %285 = vector.broadcast %284 : vector<1x32xf32> to vector<16x32xf32>
    %286 = arith.addf %283, %285 : vector<16x32xf32>
    %c0_135 = arith.constant 0 : index
    %c0_136 = arith.constant 0 : index
    %287 = vector.load %arg12[%c0_135, %c0_136] : memref<16x32xf32, #tpu.memory_space<vmem>>, vector<16x32xf32>
    tpu.vector_store %arg12[%c0_135, %c0_136], %286 {strides = array<i32>} : memref<16x32xf32, #tpu.memory_space<vmem>>, vector<16x32xf32>,
    return
  }
}

</mosaic_0001>

<llo_original>
// kernel: encoder_layer.1
$region0: #{encoder_layer.1}
  #allocation0 [shape = 'u32[]', space=smem, size = 0x4, offset = 0x4, fixed_abs, tag = 'smem constant byte address 0x4 - core index']
  #allocation1 [shape = 'u32[72,128]{1,0:T(1,128)}', space=vmem, size = 0x9000, scoped, tag = 'internal scratch']
  %s0 = inlined_call_operand.vmem [shape: f32[16,32], index: 0, kind: input, shape index: {}]
  %s1 = inlined_call_operand.vmem [shape: f32[2,8,8], index: 1, kind: input, shape index: {}]
  %s2 = inlined_call_operand.vmem [shape: bf16[4,32,8], index: 2, kind: input, shape index: {}]
  %s3 = inlined_call_operand.vmem [shape: bf16[4,32,8], index: 3, kind: input, shape index: {}]
  %s4 = inlined_call_operand.vmem [shape: bf16[4,32,8], index: 4, kind: input, shape index: {}]
  %s5 = inlined_call_operand.vmem [shape: bf16[4,8,32], index: 5, kind: input, shape index: {}]
  %s6 = inlined_call_operand.vmem [shape: f32[1,32], index: 6, kind: input, shape index: {}]
  %s7 = inlined_call_operand.vmem [shape: f32[1,32], index: 7, kind: input, shape index: {}]
  %s8 = inlined_call_operand.vmem [shape: bf16[32,64], index: 8, kind: input, shape index: {}]
  %s9 = inlined_call_operand.vmem [shape: bf16[64,32], index: 9, kind: input, shape index: {}]
  %s10 = inlined_call_operand.vmem [shape: f32[1,32], index: 10, kind: input, shape index: {}]
  %s11 = inlined_call_operand.vmem [shape: f32[1,32], index: 11, kind: input, shape index: {}]
  %s12 = inlined_call_operand.hbm [shape: f32[16,32], index: 12, kind: output, shape index: {}]
  %s13 = sld [smem:[#allocation0]]
  $region58: #{encoder_layer.1} parent=0
    _
  %s15 = ssub.s32 1, %s13
  %s16 = scalar_select 0, %s15, %s13
  $region1: #{encoder_layer.1} parent=0
    #allocation2 [shape = 'u8[8192]{0}', space=vmem, size = 0x2000, scoped, tag = 'output window, operand 0, single buffered']
    #allocation3 [shape = 's32[1]{0}', space=sflag, size = 0x4, scoped, tag = 'scoped memory for encoder_layer.1']
    %17 = vsyncpa [#allocation3], 0
    // Predicated region
    $region2: #{encoder_layer.1} parent=1 // pred_check
      _
    $region3: #{encoder_layer.1} parent=1 // pred_check_branch
      %19 = sbr.rel (0) target = $region5
    $region4: #{encoder_layer.1} parent=1 // pred_region
      _
    $region5: #{encoder_layer.1} parent=1 // pred_fallthru
      _
    // Predicated region
    $region6: #{encoder_layer.1} parent=1 // pred_check
      _
    $region7: #{encoder_layer.1} parent=1 // pred_check_branch
      %21 = sbr.rel (0) target = $region9
    $region8: #{encoder_layer.1} parent=1 // pred_region
      _
    $region9: #{encoder_layer.1} parent=1 // pred_fallthru
      _
    // Predicated region
    $region10: #{encoder_layer.1} parent=1 // pred_check
      _
    $region11: #{encoder_layer.1} parent=1 // pred_check_branch
      %23 = sbr.rel (0) target = $region13
    $region12: #{encoder_layer.1} parent=1 // pred_region
      _
    $region13: #{encoder_layer.1} parent=1 // pred_fallthru
      _
    // Predicated region
    $region14: #{encoder_layer.1} parent=1 // pred_check
      _
    $region15: #{encoder_layer.1} parent=1 // pred_check_branch
      %25 = sbr.rel (0) target = $region17
    $region16: #{encoder_layer.1} parent=1 // pred_region
      _
    $region17: #{encoder_layer.1} parent=1 // pred_fallthru
      _
    // Predicated region
    $region18: #{encoder_layer.1} parent=1 // pred_check
      _
    $region19: #{encoder_layer.1} parent=1 // pred_check_branch
      %27 = sbr.rel (0) target = $region21
    $region20: #{encoder_layer.1} parent=1 // pred_region
      _
    $region21: #{encoder_layer.1} parent=1 // pred_fallthru
      _
    // Predicated region
    $region22: #{encoder_layer.1} parent=1 // pred_check
      _
    $region23: #{encoder_layer.1} parent=1 // pred_check_branch
      %29 = sbr.rel (0) target = $region25
    $region24: #{encoder_layer.1} parent=1 // pred_region
      _
    $region25: #{encoder_layer.1} parent=1 // pred_fallthru
      _
    // Predicated region
    $region26: #{encoder_layer.1} parent=1 // pred_check
      _
    $region27: #{encoder_layer.1} parent=1 // pred_check_branch
      %31 = sbr.rel (0) target = $region29
    $region28: #{encoder_layer.1} parent=1 // pred_region
      _
    $region29: #{encoder_layer.1} parent=1 // pred_fallthru
      _
    // Predicated region
    $region30: #{encoder_layer.1} parent=1 // pred_check
      _
    $region31: #{encoder_layer.1} parent=1 // pred_check_branch
      %33 = sbr.rel (0) target = $region33
    $region32: #{encoder_layer.1} parent=1 // pred_region
      _
    $region33: #{encoder_layer.1} parent=1 // pred_fallthru
      _
    // Predicated region
    $region34: #{encoder_layer.1} parent=1 // pred_check
      _
    $region35: #{encoder_layer.1} parent=1 // pred_check_branch
      %35 = sbr.rel (0) target = $region37
    $region36: #{encoder_layer.1} parent=1 // pred_region
      _
    $region37: #{encoder_layer.1} parent=1 // pred_fallthru
      _
    // Predicated region
    $region38: #{encoder_layer.1} parent=1 // pred_check
      _
    $region39: #{encoder_layer.1} parent=1 // pred_check_branch
      %37 = sbr.rel (0) target = $region41
    $region40: #{encoder_layer.1} parent=1 // pred_region
      _
    $region41: #{encoder_layer.1} parent=1 // pred_fallthru
      _
    // Predicated region
    $region42: #{encoder_layer.1} parent=1 // pred_check
      _
    $region43: #{encoder_layer.1} parent=1 // pred_check_branch
      %39 = sbr.rel (0) target = $region45
    $region44: #{encoder_layer.1} parent=1 // pred_region
      _
    $region45: #{encoder_layer.1} parent=1 // pred_fallthru
      _
    // Predicated region
    $region46: #{encoder_layer.1} parent=1 // pred_check
      _
    $region47: #{encoder_layer.1} parent=1 // pred_check_branch
      %41 = sbr.rel (0) target = $region49
    $region48: #{encoder_layer.1} parent=1 // pred_region
      _
    $region49: #{encoder_layer.1} parent=1 // pred_fallthru
      _
    %v43 = vld [vmem:[%s0] sm:$0xff]
    %v44 = vld [vmem:[%s0 + $0x8] sm:$0xff]
    %v45 = vpack.c.bf16 %v44, %v43
    %v46 = vld [vmem:[%s1] sm:$0xff]
    %vm47 = vcmp.gt.f32.partialorder %v46, 0.0
    %v48 = vsel %vm47, -1e+09, 0.0
    %s49 = scalar_lea.vmem %s1, 8
    %v50 = vld [vmem:[%s49] sm:$0xff]
    %vm51 = vcmp.gt.f32.partialorder %v50, 0.0
    %v52 = vsel %vm51, -1e+09, 0.0
    %v53 = vld [vmem:[%s2] sm:$0xf]
    %v54 = vld [vmem:[%s2 + $0x4] sm:$0xf]
    %v55 = vld [vmem:[%s2 + $0x8] sm:$0xf]
    %v56 = vld [vmem:[%s2 + $0xc] sm:$0xf]
    %v61 = vunpack.c.l.b16 %v53
    %v62 = vunpack.c.l.b16 %v54
    %v63 = vunpack.c.l.b16 %v55
    %v64 = vunpack.c.l.b16 %v56
    %v65 = vpack.c.b16 %v62, %v61
    %v66 = vpack.c.b16 %v64, %v63
    %vm69 = vcmask 261120
    %v71 = vsel %vm69, %v45, 0
    %73 = vmatpush.bf16.msra.mxu0 0
    %74 = vmatpush.bf16.msra.mxu0 0
    %75 = vmatpush.bf16.msra.mxu0 0
    %76 = vmatpush.bf16.msra.mxu0 0
    %77 = vmatpush.bf16.msra.mxu0 0
    %78 = vmatpush.bf16.msra.mxu0 0
    %79 = vmatpush.bf16.msra.mxu0 %v66
    %80 = vmatpush.bf16.msra.mxu0 %v65
    %81 = vmatmul.bf16.gmra.mxu0 %v71
    %v82 = vpop.f32.mrf.mxu0
    %v83 = vadd.f32 0.0, %v82
    %v84 = vpop.f32.mrf.mxu0
    %v85 = vadd.f32 0.0, %v84
    %86 = vdwg.mxu0
    %v87 = vmul.f32 %v83, 0.35355338
    %v88 = vmul.f32 %v85, 0.35355338
    %v89 = vld [vmem:[%s3] sm:$0xf]
    %v90 = vld [vmem:[%s3 + $0x4] sm:$0xf]
    %v91 = vld [vmem:[%s3 + $0x8] sm:$0xf]
    %v92 = vld [vmem:[%s3 + $0xc] sm:$0xf]
    %v97 = vunpack.c.l.b16 %v89
    %v98 = vunpack.c.l.b16 %v90
    %v99 = vunpack.c.l.b16 %v91
    %v100 = vunpack.c.l.b16 %v92
    %v101 = vpack.c.b16 %v98, %v97
    %v102 = vpack.c.b16 %v100, %v99
    %105 = vmatpush.bf16.msra.mxu0 0
    %106 = vmatpush.bf16.msra.mxu0 0
    %107 = vmatpush.bf16.msra.mxu0 0
    %108 = vmatpush.bf16.msra.mxu0 0
    %109 = vmatpush.bf16.msra.mxu0 0
    %110 = vmatpush.bf16.msra.mxu0 0
    %111 = vmatpush.bf16.msra.mxu0 %v102
    %112 = vmatpush.bf16.msra.mxu0 %v101
    %113 = vmatmul.bf16.gmra.mxu0 %v71
    %v114 = vpop.f32.mrf.mxu0
    %v115 = vadd.f32 0.0, %v114
    %v116 = vpop.f32.mrf.mxu0
    %v117 = vadd.f32 0.0, %v116
    %118 = vdwg.mxu0
    %v119 = vld [vmem:[%s4] sm:$0xf]
    %v120 = vld [vmem:[%s4 + $0x4] sm:$0xf]
    %v121 = vld [vmem:[%s4 + $0x8] sm:$0xf]
    %v122 = vld [vmem:[%s4 + $0xc] sm:$0xf]
    %v127 = vunpack.c.l.b16 %v119
    %v128 = vunpack.c.l.b16 %v120
    %v129 = vunpack.c.l.b16 %v121
    %v130 = vunpack.c.l.b16 %v122
    %v131 = vpack.c.b16 %v128, %v127
    %v132 = vpack.c.b16 %v130, %v129
    %135 = vmatpush.bf16.msra.mxu0 0
    %136 = vmatpush.bf16.msra.mxu0 0
    %137 = vmatpush.bf16.msra.mxu0 0
    %138 = vmatpush.bf16.msra.mxu0 0
    %139 = vmatpush.bf16.msra.mxu0 0
    %140 = vmatpush.bf16.msra.mxu0 0
    %141 = vmatpush.bf16.msra.mxu0 %v132
    %142 = vmatpush.bf16.msra.mxu0 %v131
    %143 = vmatmul.bf16.gmra.mxu0 %v71
    %v144 = vpop.f32.mrf.mxu0
    %v145 = vadd.f32 0.0, %v144
    %v146 = vpop.f32.mrf.mxu0
    %v147 = vadd.f32 0.0, %v146
    %148 = vdwg.mxu0
    %vm149 = vcmask 64512
    %v151 = vsel %vm149, %v87, 0
    %v154 = vsel %vm149, %v115, 0
    %156 = vmatpush.xpose.msra.mxu0 0.0
    %157 = vmatpush.xpose.msra.mxu0 0.0
    %158 = vmatpush.xpose.msra.mxu0 0.0
    %159 = vmatpush.xpose.msra.mxu0 0.0
    %160 = vmatpush.xpose.msra.mxu0 0.0
    %161 = vmatpush.xpose.msra.mxu0 0.0
    %162 = vmatpush.xpose.msra.mxu0 0.0
    %163 = vmatpush.xpose.msra.mxu0 0.0
    %164 = vmatpush.xpose.msra.mxu0 0.0
    %165 = vmatpush.xpose.msra.mxu0 0.0
    %166 = vmatpush.xpose.msra.mxu0 0.0
    %167 = vmatpush.xpose.msra.mxu0 0.0
    %168 = vmatpush.xpose.msra.mxu0 0.0
    %169 = vmatpush.xpose.msra.mxu0 0.0
    %170 = vmatpush.xpose.msra.mxu0 0.0
    %171 = vmatpush.xpose.msra.mxu0 %v154
    %172 = vmatmul.f32.gmra.mxu0 %v151
    %v173 = vpop.f32.mrf.mxu0
    %v174 = vadd.f32 %v48, %v173
    %175 = vdwg.mxu0
    %v176 = vsel %vm149, %v174, -inf
    %177 = vmax.xlane.f32.xlu0 %v176
    %v178 = vpop.xlane.xlu0 %177
    %v179 = vsub.f32 %v174, %v178
    %v180 = vmul.f32 %v179, 1.442695
    %v181 = vpow.pop %v180
    %v182 = vsel %vm149, %v181, 0.0
    %183 = vadd.xlane.f32.xlu0 %v182
    %v184 = vpop.xlane.xlu0 %183
    %v185 = vrcp.pop %v184
    %v186 = vmul.f32 %v181, %v185
    %v188 = vsel %vm149, %v186, 0
    %190 = vmatpush.msra.mxu0 0.0
    %191 = vmatpush.msra.mxu0 0.0
    %192 = vmatpush.msra.mxu0 0.0
    %193 = vmatpush.msra.mxu0 0.0
    %194 = vmatpush.msra.mxu0 0.0
    %195 = vmatpush.msra.mxu0 0.0
    %196 = vmatpush.msra.mxu0 0.0
    %197 = vmatpush.msra.mxu0 0.0
    %198 = vmatpush.msra.mxu0 0.0
    %199 = vmatpush.msra.mxu0 0.0
    %200 = vmatpush.msra.mxu0 0.0
    %201 = vmatpush.msra.mxu0 0.0
    %202 = vmatpush.msra.mxu0 0.0
    %203 = vmatpush.msra.mxu0 0.0
    %204 = vmatpush.msra.mxu0 0.0
    %205 = vmatpush.msra.mxu0 %v145
    %206 = vmatmul.f32.gmra.mxu0 %v188
    %v207 = vpop.f32.mrf.mxu0
    %v208 = vadd.f32 0.0, %v207
    %209 = vdwg.mxu0
    %v211 = vsel %vm149, %v88, 0
    %v214 = vsel %vm149, %v117, 0
    %216 = vmatpush.xpose.msra.mxu0 0.0
    %217 = vmatpush.xpose.msra.mxu0 0.0
    %218 = vmatpush.xpose.msra.mxu0 0.0
    %219 = vmatpush.xpose.msra.mxu0 0.0
    %220 = vmatpush.xpose.msra.mxu0 0.0
    %221 = vmatpush.xpose.msra.mxu0 0.0
    %222 = vmatpush.xpose.msra.mxu0 0.0
    %223 = vmatpush.xpose.msra.mxu0 0.0
    %224 = vmatpush.xpose.msra.mxu0 0.0
    %225 = vmatpush.xpose.msra.mxu0 0.0
    %226 = vmatpush.xpose.msra.mxu0 0.0
    %227 = vmatpush.xpose.msra.mxu0 0.0
    %228 = vmatpush.xpose.msra.mxu0 0.0
    %229 = vmatpush.xpose.msra.mxu0 0.0
    %230 = vmatpush.xpose.msra.mxu0 0.0
    %231 = vmatpush.xpose.msra.mxu0 %v214
    %232 = vmatmul.f32.gmra.mxu0 %v211
    %v233 = vpop.f32.mrf.mxu0
    %v234 = vadd.f32 %v52, %v233
    %235 = vdwg.mxu0
    %v236 = vsel %vm149, %v234, -inf
    %237 = vmax.xlane.f32.xlu0 %v236
    %v238 = vpop.xlane.xlu0 %237
    %v239 = vsub.f32 %v234, %v238
    %v240 = vmul.f32 %v239, 1.442695
    %v241 = vpow.pop %v240
    %v242 = vsel %vm149, %v241, 0.0
    %243 = vadd.xlane.f32.xlu0 %v242
    %v244 = vpop.xlane.xlu0 %243
    %v245 = vrcp.pop %v244
    %v246 = vmul.f32 %v241, %v245
    %v248 = vsel %vm149, %v246, 0
    %250 = vmatpush.msra.mxu0 0.0
    %251 = vmatpush.msra.mxu0 0.0
    %252 = vmatpush.msra.mxu0 0.0
    %253 = vmatpush.msra.mxu0 0.0
    %254 = vmatpush.msra.mxu0 0.0
    %255 = vmatpush.msra.mxu0 0.0
    %256 = vmatpush.msra.mxu0 0.0
    %257 = vmatpush.msra.mxu0 0.0
    %258 = vmatpush.msra.mxu0 0.0
    %259 = vmatpush.msra.mxu0 0.0
    %260 = vmatpush.msra.mxu0 0.0
    %261 = vmatpush.msra.mxu0 0.0
    %262 = vmatpush.msra.mxu0 0.0
    %263 = vmatpush.msra.mxu0 0.0
    %264 = vmatpush.msra.mxu0 0.0
    %265 = vmatpush.msra.mxu0 %v147
    %266 = vmatmul.f32.gmra.mxu0 %v248
    %v267 = vpop.f32.mrf.mxu0
    %v268 = vadd.f32 0.0, %v267
    %269 = vdwg.mxu0
    %v270 = vpack.c.bf16 %v268, %v208
    %v271 = vld [vmem:[%s5] sm:$0xf]
    %s272 = scalar_lea.vmem %s2, 16
    %v273 = vld [vmem:[%s272] sm:$0xf]
    %v274 = vld [vmem:[%s272 + $0x4] sm:$0xf]
    %v275 = vld [vmem:[%s272 + $0x8] sm:$0xf]
    %v276 = vld [vmem:[%s272 + $0xc] sm:$0xf]
    %v281 = vunpack.c.l.b16 %v273
    %v282 = vunpack.c.l.b16 %v274
    %v283 = vunpack.c.l.b16 %v275
    %v284 = vunpack.c.l.b16 %v276
    %v285 = vpack.c.b16 %v282, %v281
    %v286 = vpack.c.b16 %v284, %v283
    %289 = vmatpush.bf16.msra.mxu0 0
    %290 = vmatpush.bf16.msra.mxu0 0
    %291 = vmatpush.bf16.msra.mxu0 0
    %292 = vmatpush.bf16.msra.mxu0 0
    %293 = vmatpush.bf16.msra.mxu0 0
    %294 = vmatpush.bf16.msra.mxu0 0
    %295 = vmatpush.bf16.msra.mxu0 %v286
    %296 = vmatpush.bf16.msra.mxu0 %v285
    %297 = vmatmul.bf16.gmra.mxu0 %v71
    %v298 = vpop.f32.mrf.mxu0
    %v299 = vadd.f32 0.0, %v298
    %v300 = vpop.f32.mrf.mxu0
    %v301 = vadd.f32 0.0, %v300
    %302 = vdwg.mxu0
    %v303 = vmul.f32 %v299, 0.35355338
    %v304 = vmul.f32 %v301, 0.35355338
    %s305 = scalar_lea.vmem %s3, 16
    %v306 = vld [vmem:[%s305] sm:$0xf]
    %v307 = vld [vmem:[%s305 + $0x4] sm:$0xf]
    %v308 = vld [vmem:[%s305 + $0x8] sm:$0xf]
    %v309 = vld [vmem:[%s305 + $0xc] sm:$0xf]
    %v314 = vunpack.c.l.b16 %v306
    %v315 = vunpack.c.l.b16 %v307
    %v316 = vunpack.c.l.b16 %v308
    %v317 = vunpack.c.l.b16 %v309
    %v318 = vpack.c.b16 %v315, %v314
    %v319 = vpack.c.b16 %v317, %v316
    %322 = vmatpush.bf16.msra.mxu0 0
    %323 = vmatpush.bf16.msra.mxu0 0
    %324 = vmatpush.bf16.msra.mxu0 0
    %325 = vmatpush.bf16.msra.mxu0 0
    %326 = vmatpush.bf16.msra.mxu0 0
    %327 = vmatpush.bf16.msra.mxu0 0
    %328 = vmatpush.bf16.msra.mxu0 %v319
    %329 = vmatpush.bf16.msra.mxu0 %v318
    %330 = vmatmul.bf16.gmra.mxu0 %v71
    %v331 = vpop.f32.mrf.mxu0
    %v332 = vadd.f32 0.0, %v331
    %v333 = vpop.f32.mrf.mxu0
    %v334 = vadd.f32 0.0, %v333
    %335 = vdwg.mxu0
    %s336 = scalar_lea.vmem %s4, 16
    %v337 = vld [vmem:[%s336] sm:$0xf]
    %v338 = vld [vmem:[%s336 + $0x4] sm:$0xf]
    %v339 = vld [vmem:[%s336 + $0x8] sm:$0xf]
    %v340 = vld [vmem:[%s336 + $0xc] sm:$0xf]
    %v345 = vunpack.c.l.b16 %v337
    %v346 = vunpack.c.l.b16 %v338
    %v347 = vunpack.c.l.b16 %v339
    %v348 = vunpack.c.l.b16 %v340
    %v349 = vpack.c.b16 %v346, %v345
    %v350 = vpack.c.b16 %v348, %v347
    %353 = vmatpush.bf16.msra.mxu0 0
    %354 = vmatpush.bf16.msra.mxu0 0
    %355 = vmatpush.bf16.msra.mxu0 0
    %356 = vmatpush.bf16.msra.mxu0 0
    %357 = vmatpush.bf16.msra.mxu0 0
    %358 = vmatpush.bf16.msra.mxu0 0
    %359 = vmatpush.bf16.msra.mxu0 %v350
    %360 = vmatpush.bf16.msra.mxu0 %v349
    %361 = vmatmul.bf16.gmra.mxu0 %v71
    %v362 = vpop.f32.mrf.mxu0
    %v363 = vadd.f32 0.0, %v362
    %v364 = vpop.f32.mrf.mxu0
    %v365 = vadd.f32 0.0, %v364
    %366 = vdwg.mxu0
    %v368 = vsel %vm149, %v303, 0
    %v371 = vsel %vm149, %v332, 0
    %373 = vmatpush.xpose.msra.mxu0 0.0
    %374 = vmatpush.xpose.msra.mxu0 0.0
    %375 = vmatpush.xpose.msra.mxu0 0.0
    %376 = vmatpush.xpose.msra.mxu0 0.0
    %377 = vmatpush.xpose.msra.mxu0 0.0
    %378 = vmatpush.xpose.msra.mxu0 0.0
    %379 = vmatpush.xpose.msra.mxu0 0.0
    %380 = vmatpush.xpose.msra.mxu0 0.0
    %381 = vmatpush.xpose.msra.mxu0 0.0
    %382 = vmatpush.xpose.msra.mxu0 0.0
    %383 = vmatpush.xpose.msra.mxu0 0.0
    %384 = vmatpush.xpose.msra.mxu0 0.0
    %385 = vmatpush.xpose.msra.mxu0 0.0
    %386 = vmatpush.xpose.msra.mxu0 0.0
    %387 = vmatpush.xpose.msra.mxu0 0.0
    %388 = vmatpush.xpose.msra.mxu0 %v371
    %389 = vmatmul.f32.gmra.mxu0 %v368
    %v390 = vpop.f32.mrf.mxu0
    %v391 = vadd.f32 %v48, %v390
    %392 = vdwg.mxu0
    %v393 = vsel %vm149, %v391, -inf
    %394 = vmax.xlane.f32.xlu0 %v393
    %v395 = vpop.xlane.xlu0 %394
    %v396 = vsub.f32 %v391, %v395
    %v397 = vmul.f32 %v396, 1.442695
    %v398 = vpow.pop %v397
    %v399 = vsel %vm149, %v398, 0.0
    %400 = vadd.xlane.f32.xlu0 %v399
    %v401 = vpop.xlane.xlu0 %400
    %v402 = vrcp.pop %v401
    %v403 = vmul.f32 %v398, %v402
    %v405 = vsel %vm149, %v403, 0
    %407 = vmatpush.msra.mxu0 0.0
    %408 = vmatpush.msra.mxu0 0.0
    %409 = vmatpush.msra.mxu0 0.0
    %410 = vmatpush.msra.mxu0 0.0
    %411 = vmatpush.msra.mxu0 0.0
    %412 = vmatpush.msra.mxu0 0.0
    %413 = vmatpush.msra.mxu0 0.0
    %414 = vmatpush.msra.mxu0 0.0
    %415 = vmatpush.msra.mxu0 0.0
    %416 = vmatpush.msra.mxu0 0.0
    %417 = vmatpush.msra.mxu0 0.0
    %418 = vmatpush.msra.mxu0 0.0
    %419 = vmatpush.msra.mxu0 0.0
    %420 = vmatpush.msra.mxu0 0.0
    %421 = vmatpush.msra.mxu0 0.0
    %422 = vmatpush.msra.mxu0 %v363
    %423 = vmatmul.f32.gmra.mxu0 %v405
    %v424 = vpop.f32.mrf.mxu0
    %v425 = vadd.f32 0.0, %v424
    %426 = vdwg.mxu0
    %v428 = vsel %vm149, %v304, 0
    %v431 = vsel %vm149, %v334, 0
    %433 = vmatpush.xpose.msra.mxu0 0.0
    %434 = vmatpush.xpose.msra.mxu0 0.0
    %435 = vmatpush.xpose.msra.mxu0 0.0
    %436 = vmatpush.xpose.msra.mxu0 0.0
    %437 = vmatpush.xpose.msra.mxu0 0.0
    %438 = vmatpush.xpose.msra.mxu0 0.0
    %439 = vmatpush.xpose.msra.mxu0 0.0
    %440 = vmatpush.xpose.msra.mxu0 0.0
    %441 = vmatpush.xpose.msra.mxu0 0.0
    %442 = vmatpush.xpose.msra.mxu0 0.0
    %443 = vmatpush.xpose.msra.mxu0 0.0
    %444 = vmatpush.xpose.msra.mxu0 0.0
    %445 = vmatpush.xpose.msra.mxu0 0.0
    %446 = vmatpush.xpose.msra.mxu0 0.0
    %447 = vmatpush.xpose.msra.mxu0 0.0
    %448 = vmatpush.xpose.msra.mxu0 %v431
    %449 = vmatmul.f32.gmra.mxu0 %v428
    %v450 = vpop.f32.mrf.mxu0
    %v451 = vadd.f32 %v52, %v450
    %452 = vdwg.mxu0
    %v453 = vsel %vm149, %v451, -inf
    %454 = vmax.xlane.f32.xlu0 %v453
    %v455 = vpop.xlane.xlu0 %454
    %v456 = vsub.f32 %v451, %v455
    %v457 = vmul.f32 %v456, 1.442695
    %v458 = vpow.pop %v457
    %v459 = vsel %vm149, %v458, 0.0
    %460 = vadd.xlane.f32.xlu0 %v459
    %v461 = vpop.xlane.xlu0 %460
    %v462 = vrcp.pop %v461
    %v463 = vmul.f32 %v458, %v462
    %v465 = vsel %vm149, %v463, 0
    %467 = vmatpush.msra.mxu0 0.0
    %468 = vmatpush.msra.mxu0 0.0
    %469 = vmatpush.msra.mxu0 0.0
    %470 = vmatpush.msra.mxu0 0.0
    %471 = vmatpush.msra.mxu0 0.0
    %472 = vmatpush.msra.mxu0 0.0
    %473 = vmatpush.msra.mxu0 0.0
    %474 = vmatpush.msra.mxu0 0.0
    %475 = vmatpush.msra.mxu0 0.0
    %476 = vmatpush.msra.mxu0 0.0
    %477 = vmatpush.msra.mxu0 0.0
    %478 = vmatpush.msra.mxu0 0.0
    %479 = vmatpush.msra.mxu0 0.0
    %480 = vmatpush.msra.mxu0 0.0
    %481 = vmatpush.msra.mxu0 0.0
    %482 = vmatpush.msra.mxu0 %v365
    %483 = vmatmul.f32.gmra.mxu0 %v465
    %v484 = vpop.f32.mrf.mxu0
    %v485 = vadd.f32 0.0, %v484
    %486 = vdwg.mxu0
    %v487 = vpack.c.bf16 %v485, %v425
    %s488 = scalar_lea.vmem %s5, 4
    %v489 = vld [vmem:[%s488] sm:$0xf]
    %v491 = vsel %vm149, %v487, 0
    %vm493 = vcmask 1043456
    %v495 = vsel %vm493, %v489, 0
    %497 = vmatpush.bf16.msra.mxu0 0
    %498 = vmatpush.bf16.msra.mxu0 0
    %499 = vmatpush.bf16.msra.mxu0 0
    %500 = vmatpush.bf16.msra.mxu0 0
    %501 = vmatpush.bf16.msra.mxu0 0
    %502 = vmatpush.bf16.msra.mxu0 0
    %503 = vmatpush.bf16.msra.mxu0 0
    %504 = vmatpush.bf16.msra.mxu0 %v495
    %505 = vmatmul.bf16.gmra.mxu0 %v491
    %v506 = vpop.f32.mrf.mxu0
    %v507 = vadd.f32 0.0, %v506
    %v508 = vpop.f32.mrf.mxu0
    %v509 = vadd.f32 0.0, %v508
    %510 = vdwg.mxu0
    %v512 = vsel %vm149, %v270, 0
    %v515 = vsel %vm493, %v271, 0
    %517 = vmatpush.bf16.msra.mxu0 0
    %518 = vmatpush.bf16.msra.mxu0 0
    %519 = vmatpush.bf16.msra.mxu0 0
    %520 = vmatpush.bf16.msra.mxu0 0
    %521 = vmatpush.bf16.msra.mxu0 0
    %522 = vmatpush.bf16.msra.mxu0 0
    %523 = vmatpush.bf16.msra.mxu0 0
    %524 = vmatpush.bf16.msra.mxu0 %v515
    %525 = vmatmul.bf16.gmra.mxu0 %v512
    %v526 = vpop.f32.mrf.mxu0
    %v527 = vadd.f32 %v507, %v526
    %v528 = vpop.f32.mrf.mxu0
    %v529 = vadd.f32 %v509, %v528
    %530 = vdwg.mxu0
    %s531 = scalar_lea.vmem %s2, 32
    %v532 = vld [vmem:[%s531] sm:$0xf]
    %v533 = vld [vmem:[%s531 + $0x4] sm:$0xf]
    %v534 = vld [vmem:[%s531 + $0x8] sm:$0xf]
    %v535 = vld [vmem:[%s531 + $0xc] sm:$0xf]
    %v540 = vunpack.c.l.b16 %v532
    %v541 = vunpack.c.l.b16 %v533
    %v542 = vunpack.c.l.b16 %v534
    %v543 = vunpack.c.l.b16 %v535
    %v544 = vpack.c.b16 %v541, %v540
    %v545 = vpack.c.b16 %v543, %v542
    %548 = vmatpush.bf16.msra.mxu0 0
    %549 = vmatpush.bf16.msra.mxu0 0
    %550 = vmatpush.bf16.msra.mxu0 0
    %551 = vmatpush.bf16.msra.mxu0 0
    %552 = vmatpush.bf16.msra.mxu0 0
    %553 = vmatpush.bf16.msra.mxu0 0
    %554 = vmatpush.bf16.msra.mxu0 %v545
    %555 = vmatpush.bf16.msra.mxu0 %v544
    %556 = vmatmul.bf16.gmra.mxu0 %v71
    %v557 = vpop.f32.mrf.mxu0
    %v558 = vadd.f32 0.0, %v557
    %v559 = vpop.f32.mrf.mxu0
    %v560 = vadd.f32 0.0, %v559
    %561 = vdwg.mxu0
    %v562 = vmul.f32 %v558, 0.35355338
    %v563 = vmul.f32 %v560, 0.35355338
    %s564 = scalar_lea.vmem %s3, 32
    %v565 = vld [vmem:[%s564] sm:$0xf]
    %v566 = vld [vmem:[%s564 + $0x4] sm:$0xf]
    %v567 = vld [vmem:[%s564 + $0x8] sm:$0xf]
    %v568 = vld [vmem:[%s564 + $0xc] sm:$0xf]
    %v573 = vunpack.c.l.b16 %v565
    %v574 = vunpack.c.l.b16 %v566
    %v575 = vunpack.c.l.b16 %v567
    %v576 = vunpack.c.l.b16 %v568
    %v577 = vpack.c.b16 %v574, %v573
    %v578 = vpack.c.b16 %v576, %v575
    %581 = vmatpush.bf16.msra.mxu0 0
    %582 = vmatpush.bf16.msra.mxu0 0
    %583 = vmatpush.bf16.msra.mxu0 0
    %584 = vmatpush.bf16.msra.mxu0 0
    %585 = vmatpush.bf16.msra.mxu0 0
    %586 = vmatpush.bf16.msra.mxu0 0
    %587 = vmatpush.bf16.msra.mxu0 %v578
    %588 = vmatpush.bf16.msra.mxu0 %v577
    %589 = vmatmul.bf16.gmra.mxu0 %v71
    %v590 = vpop.f32.mrf.mxu0
    %v591 = vadd.f32 0.0, %v590
    %v592 = vpop.f32.mrf.mxu0
    %v593 = vadd.f32 0.0, %v592
    %594 = vdwg.mxu0
    %s595 = scalar_lea.vmem %s4, 32
    %v596 = vld [vmem:[%s595] sm:$0xf]
    %v597 = vld [vmem:[%s595 + $0x4] sm:$0xf]
    %v598 = vld [vmem:[%s595 + $0x8] sm:$0xf]
    %v599 = vld [vmem:[%s595 + $0xc] sm:$0xf]
    %v604 = vunpack.c.l.b16 %v596
    %v605 = vunpack.c.l.b16 %v597
    %v606 = vunpack.c.l.b16 %v598
    %v607 = vunpack.c.l.b16 %v599
    %v608 = vpack.c.b16 %v605, %v604
    %v609 = vpack.c.b16 %v607, %v606
    %612 = vmatpush.bf16.msra.mxu0 0
    %613 = vmatpush.bf16.msra.mxu0 0
    %614 = vmatpush.bf16.msra.mxu0 0
    %615 = vmatpush.bf16.msra.mxu0 0
    %616 = vmatpush.bf16.msra.mxu0 0
    %617 = vmatpush.bf16.msra.mxu0 0
    %618 = vmatpush.bf16.msra.mxu0 %v609
    %619 = vmatpush.bf16.msra.mxu0 %v608
    %620 = vmatmul.bf16.gmra.mxu0 %v71
    %v621 = vpop.f32.mrf.mxu0
    %v622 = vadd.f32 0.0, %v621
    %v623 = vpop.f32.mrf.mxu0
    %v624 = vadd.f32 0.0, %v623
    %625 = vdwg.mxu0
    %v627 = vsel %vm149, %v562, 0
    %v630 = vsel %vm149, %v591, 0
    %632 = vmatpush.xpose.msra.mxu0 0.0
    %633 = vmatpush.xpose.msra.mxu0 0.0
    %634 = vmatpush.xpose.msra.mxu0 0.0
    %635 = vmatpush.xpose.msra.mxu0 0.0
    %636 = vmatpush.xpose.msra.mxu0 0.0
    %637 = vmatpush.xpose.msra.mxu0 0.0
    %638 = vmatpush.xpose.msra.mxu0 0.0
    %639 = vmatpush.xpose.msra.mxu0 0.0
    %640 = vmatpush.xpose.msra.mxu0 0.0
    %641 = vmatpush.xpose.msra.mxu0 0.0
    %642 = vmatpush.xpose.msra.mxu0 0.0
    %643 = vmatpush.xpose.msra.mxu0 0.0
    %644 = vmatpush.xpose.msra.mxu0 0.0
    %645 = vmatpush.xpose.msra.mxu0 0.0
    %646 = vmatpush.xpose.msra.mxu0 0.0
    %647 = vmatpush.xpose.msra.mxu0 %v630
    %648 = vmatmul.f32.gmra.mxu0 %v627
    %v649 = vpop.f32.mrf.mxu0
    %v650 = vadd.f32 %v48, %v649
    %651 = vdwg.mxu0
    %v652 = vsel %vm149, %v650, -inf
    %653 = vmax.xlane.f32.xlu0 %v652
    %v654 = vpop.xlane.xlu0 %653
    %v655 = vsub.f32 %v650, %v654
    %v656 = vmul.f32 %v655, 1.442695
    %v657 = vpow.pop %v656
    %v658 = vsel %vm149, %v657, 0.0
    %659 = vadd.xlane.f32.xlu0 %v658
    %v660 = vpop.xlane.xlu0 %659
    %v661 = vrcp.pop %v660
    %v662 = vmul.f32 %v657, %v661
    %v664 = vsel %vm149, %v662, 0
    %666 = vmatpush.msra.mxu0 0.0
    %667 = vmatpush.msra.mxu0 0.0
    %668 = vmatpush.msra.mxu0 0.0
    %669 = vmatpush.msra.mxu0 0.0
    %670 = vmatpush.msra.mxu0 0.0
    %671 = vmatpush.msra.mxu0 0.0
    %672 = vmatpush.msra.mxu0 0.0
    %673 = vmatpush.msra.mxu0 0.0
    %674 = vmatpush.msra.mxu0 0.0
    %675 = vmatpush.msra.mxu0 0.0
    %676 = vmatpush.msra.mxu0 0.0
    %677 = vmatpush.msra.mxu0 0.0
    %678 = vmatpush.msra.mxu0 0.0
    %679 = vmatpush.msra.mxu0 0.0
    %680 = vmatpush.msra.mxu0 0.0
    %681 = vmatpush.msra.mxu0 %v622
    %682 = vmatmul.f32.gmra.mxu0 %v664
    %v683 = vpop.f32.mrf.mxu0
    %v684 = vadd.f32 0.0, %v683
    %685 = vdwg.mxu0
    %v687 = vsel %vm149, %v563, 0
    %v690 = vsel %vm149, %v593, 0
    %692 = vmatpush.xpose.msra.mxu0 0.0
    %693 = vmatpush.xpose.msra.mxu0 0.0
    %694 = vmatpush.xpose.msra.mxu0 0.0
    %695 = vmatpush.xpose.msra.mxu0 0.0
    %696 = vmatpush.xpose.msra.mxu0 0.0
    %697 = vmatpush.xpose.msra.mxu0 0.0
    %698 = vmatpush.xpose.msra.mxu0 0.0
    %699 = vmatpush.xpose.msra.mxu0 0.0
    %700 = vmatpush.xpose.msra.mxu0 0.0
    %701 = vmatpush.xpose.msra.mxu0 0.0
    %702 = vmatpush.xpose.msra.mxu0 0.0
    %703 = vmatpush.xpose.msra.mxu0 0.0
    %704 = vmatpush.xpose.msra.mxu0 0.0
    %705 = vmatpush.xpose.msra.mxu0 0.0
    %706 = vmatpush.xpose.msra.mxu0 0.0
    %707 = vmatpush.xpose.msra.mxu0 %v690
    %708 = vmatmul.f32.gmra.mxu0 %v687
    %v709 = vpop.f32.mrf.mxu0
    %v710 = vadd.f32 %v52, %v709
    %711 = vdwg.mxu0
    %v712 = vsel %vm149, %v710, -inf
    %713 = vmax.xlane.f32.xlu0 %v712
    %v714 = vpop.xlane.xlu0 %713
    %v715 = vsub.f32 %v710, %v714
    %v716 = vmul.f32 %v715, 1.442695
    %v717 = vpow.pop %v716
    %v718 = vsel %vm149, %v717, 0.0
    %719 = vadd.xlane.f32.xlu0 %v718
    %v720 = vpop.xlane.xlu0 %719
    %v721 = vrcp.pop %v720
    %v722 = vmul.f32 %v717, %v721
    %v724 = vsel %vm149, %v722, 0
    %726 = vmatpush.msra.mxu0 0.0
    %727 = vmatpush.msra.mxu0 0.0
    %728 = vmatpush.msra.mxu0 0.0
    %729 = vmatpush.msra.mxu0 0.0
    %730 = vmatpush.msra.mxu0 0.0
    %731 = vmatpush.msra.mxu0 0.0
    %732 = vmatpush.msra.mxu0 0.0
    %733 = vmatpush.msra.mxu0 0.0
    %734 = vmatpush.msra.mxu0 0.0
    %735 = vmatpush.msra.mxu0 0.0
    %736 = vmatpush.msra.mxu0 0.0
    %737 = vmatpush.msra.mxu0 0.0
    %738 = vmatpush.msra.mxu0 0.0
    %739 = vmatpush.msra.mxu0 0.0
    %740 = vmatpush.msra.mxu0 0.0
    %741 = vmatpush.msra.mxu0 %v624
    %742 = vmatmul.f32.gmra.mxu0 %v724
    %v743 = vpop.f32.mrf.mxu0
    %v744 = vadd.f32 0.0, %v743
    %745 = vdwg.mxu0
    %v746 = vpack.c.bf16 %v744, %v684
    %s747 = scalar_lea.vmem %s5, 8
    %v748 = vld [vmem:[%s747] sm:$0xf]
    %v750 = vsel %vm149, %v746, 0
    %v753 = vsel %vm493, %v748, 0
    %755 = vmatpush.bf16.msra.mxu0 0
    %756 = vmatpush.bf16.msra.mxu0 0
    %757 = vmatpush.bf16.msra.mxu0 0
    %758 = vmatpush.bf16.msra.mxu0 0
    %759 = vmatpush.bf16.msra.mxu0 0
    %760 = vmatpush.bf16.msra.mxu0 0
    %761 = vmatpush.bf16.msra.mxu0 0
    %762 = vmatpush.bf16.msra.mxu0 %v753
    %763 = vmatmul.bf16.gmra.mxu0 %v750
    %v764 = vpop.f32.mrf.mxu0
    %v765 = vadd.f32 0.0, %v764
    %v766 = vpop.f32.mrf.mxu0
    %v767 = vadd.f32 0.0, %v766
    %768 = vdwg.mxu0
    %v769 = vadd.f32 %v527, %v765
    %v770 = vadd.f32 %v529, %v767
    %s771 = scalar_lea.vmem %s2, 48
    %v772 = vld [vmem:[%s771] sm:$0xf]
    %v773 = vld [vmem:[%s771 + $0x4] sm:$0xf]
    %v774 = vld [vmem:[%s771 + $0x8] sm:$0xf]
    %v775 = vld [vmem:[%s771 + $0xc] sm:$0xf]
    %v780 = vunpack.c.l.b16 %v772
    %v781 = vunpack.c.l.b16 %v773
    %v782 = vunpack.c.l.b16 %v774
    %v783 = vunpack.c.l.b16 %v775
    %v784 = vpack.c.b16 %v781, %v780
    %v785 = vpack.c.b16 %v783, %v782
    %788 = vmatpush.bf16.msra.mxu0 0
    %789 = vmatpush.bf16.msra.mxu0 0
    %790 = vmatpush.bf16.msra.mxu0 0
    %791 = vmatpush.bf16.msra.mxu0 0
    %792 = vmatpush.bf16.msra.mxu0 0
    %793 = vmatpush.bf16.msra.mxu0 0
    %794 = vmatpush.bf16.msra.mxu0 %v785
    %795 = vmatpush.bf16.msra.mxu0 %v784
    %796 = vmatmul.bf16.gmra.mxu0 %v71
    %v797 = vpop.f32.mrf.mxu0
    %v798 = vadd.f32 0.0, %v797
    %v799 = vpop.f32.mrf.mxu0
    %v800 = vadd.f32 0.0, %v799
    %801 = vdwg.mxu0
    %v802 = vmul.f32 %v798, 0.35355338
    %v803 = vmul.f32 %v800, 0.35355338
    %s804 = scalar_lea.vmem %s3, 48
    %v805 = vld [vmem:[%s804] sm:$0xf]
    %v806 = vld [vmem:[%s804 + $0x4] sm:$0xf]
    %v807 = vld [vmem:[%s804 + $0x8] sm:$0xf]
    %v808 = vld [vmem:[%s804 + $0xc] sm:$0xf]
    %v813 = vunpack.c.l.b16 %v805
    %v814 = vunpack.c.l.b16 %v806
    %v815 = vunpack.c.l.b16 %v807
    %v816 = vunpack.c.l.b16 %v808
    %v817 = vpack.c.b16 %v814, %v813
    %v818 = vpack.c.b16 %v816, %v815
    %821 = vmatpush.bf16.msra.mxu0 0
    %822 = vmatpush.bf16.msra.mxu0 0
    %823 = vmatpush.bf16.msra.mxu0 0
    %824 = vmatpush.bf16.msra.mxu0 0
    %825 = vmatpush.bf16.msra.mxu0 0
    %826 = vmatpush.bf16.msra.mxu0 0
    %827 = vmatpush.bf16.msra.mxu0 %v818
    %828 = vmatpush.bf16.msra.mxu0 %v817
    %829 = vmatmul.bf16.gmra.mxu0 %v71
    %v830 = vpop.f32.mrf.mxu0
    %v831 = vadd.f32 0.0, %v830
    %v832 = vpop.f32.mrf.mxu0
    %v833 = vadd.f32 0.0, %v832
    %834 = vdwg.mxu0
    %s835 = scalar_lea.vmem %s4, 48
    %v836 = vld [vmem:[%s835] sm:$0xf]
    %v837 = vld [vmem:[%s835 + $0x4] sm:$0xf]
    %v838 = vld [vmem:[%s835 + $0x8] sm:$0xf]
    %v839 = vld [vmem:[%s835 + $0xc] sm:$0xf]
    %v844 = vunpack.c.l.b16 %v836
    %v845 = vunpack.c.l.b16 %v837
    %v846 = vunpack.c.l.b16 %v838
    %v847 = vunpack.c.l.b16 %v839
    %v848 = vpack.c.b16 %v845, %v844
    %v849 = vpack.c.b16 %v847, %v846
    %852 = vmatpush.bf16.msra.mxu0 0
    %853 = vmatpush.bf16.msra.mxu0 0
    %854 = vmatpush.bf16.msra.mxu0 0
    %855 = vmatpush.bf16.msra.mxu0 0
    %856 = vmatpush.bf16.msra.mxu0 0
    %857 = vmatpush.bf16.msra.mxu0 0
    %858 = vmatpush.bf16.msra.mxu0 %v849
    %859 = vmatpush.bf16.msra.mxu0 %v848
    %860 = vmatmul.bf16.gmra.mxu0 %v71
    %v861 = vpop.f32.mrf.mxu0
    %v862 = vadd.f32 0.0, %v861
    %v863 = vpop.f32.mrf.mxu0
    %v864 = vadd.f32 0.0, %v863
    %865 = vdwg.mxu0
    %v867 = vsel %vm149, %v802, 0
    %v870 = vsel %vm149, %v831, 0
    %872 = vmatpush.xpose.msra.mxu0 0.0
    %873 = vmatpush.xpose.msra.mxu0 0.0
    %874 = vmatpush.xpose.msra.mxu0 0.0
    %875 = vmatpush.xpose.msra.mxu0 0.0
    %876 = vmatpush.xpose.msra.mxu0 0.0
    %877 = vmatpush.xpose.msra.mxu0 0.0
    %878 = vmatpush.xpose.msra.mxu0 0.0
    %879 = vmatpush.xpose.msra.mxu0 0.0
    %880 = vmatpush.xpose.msra.mxu0 0.0
    %881 = vmatpush.xpose.msra.mxu0 0.0
    %882 = vmatpush.xpose.msra.mxu0 0.0
    %883 = vmatpush.xpose.msra.mxu0 0.0
    %884 = vmatpush.xpose.msra.mxu0 0.0
    %885 = vmatpush.xpose.msra.mxu0 0.0
    %886 = vmatpush.xpose.msra.mxu0 0.0
    %887 = vmatpush.xpose.msra.mxu0 %v870
    %888 = vmatmul.f32.gmra.mxu0 %v867
    %v889 = vpop.f32.mrf.mxu0
    %v890 = vadd.f32 %v48, %v889
    %891 = vdwg.mxu0
    %v892 = vsel %vm149, %v890, -inf
    %893 = vmax.xlane.f32.xlu0 %v892
    %v894 = vpop.xlane.xlu0 %893
    %v895 = vsub.f32 %v890, %v894
    %v896 = vmul.f32 %v895, 1.442695
    %v897 = vpow.pop %v896
    %v898 = vsel %vm149, %v897, 0.0
    %899 = vadd.xlane.f32.xlu0 %v898
    %v900 = vpop.xlane.xlu0 %899
    %v901 = vrcp.pop %v900
    %v902 = vmul.f32 %v897, %v901
    %v904 = vsel %vm149, %v902, 0
    %906 = vmatpush.msra.mxu0 0.0
    %907 = vmatpush.msra.mxu0 0.0
    %908 = vmatpush.msra.mxu0 0.0
    %909 = vmatpush.msra.mxu0 0.0
    %910 = vmatpush.msra.mxu0 0.0
    %911 = vmatpush.msra.mxu0 0.0
    %912 = vmatpush.msra.mxu0 0.0
    %913 = vmatpush.msra.mxu0 0.0
    %914 = vmatpush.msra.mxu0 0.0
    %915 = vmatpush.msra.mxu0 0.0
    %916 = vmatpush.msra.mxu0 0.0
    %917 = vmatpush.msra.mxu0 0.0
    %918 = vmatpush.msra.mxu0 0.0
    %919 = vmatpush.msra.mxu0 0.0
    %920 = vmatpush.msra.mxu0 0.0
    %921 = vmatpush.msra.mxu0 %v862
    %922 = vmatmul.f32.gmra.mxu0 %v904
    %v923 = vpop.f32.mrf.mxu0
    %v924 = vadd.f32 0.0, %v923
    %925 = vdwg.mxu0
    %v927 = vsel %vm149, %v803, 0
    %v930 = vsel %vm149, %v833, 0
    %932 = vmatpush.xpose.msra.mxu0 0.0
    %933 = vmatpush.xpose.msra.mxu0 0.0
    %934 = vmatpush.xpose.msra.mxu0 0.0
    %935 = vmatpush.xpose.msra.mxu0 0.0
    %936 = vmatpush.xpose.msra.mxu0 0.0
    %937 = vmatpush.xpose.msra.mxu0 0.0
    %938 = vmatpush.xpose.msra.mxu0 0.0
    %939 = vmatpush.xpose.msra.mxu0 0.0
    %940 = vmatpush.xpose.msra.mxu0 0.0
    %941 = vmatpush.xpose.msra.mxu0 0.0
    %942 = vmatpush.xpose.msra.mxu0 0.0
    %943 = vmatpush.xpose.msra.mxu0 0.0
    %944 = vmatpush.xpose.msra.mxu0 0.0
    %945 = vmatpush.xpose.msra.mxu0 0.0
    %946 = vmatpush.xpose.msra.mxu0 0.0
    %947 = vmatpush.xpose.msra.mxu0 %v930
    %948 = vmatmul.f32.gmra.mxu0 %v927
    %v949 = vpop.f32.mrf.mxu0
    %v950 = vadd.f32 %v52, %v949
    %951 = vdwg.mxu0
    %v952 = vsel %vm149, %v950, -inf
    %953 = vmax.xlane.f32.xlu0 %v952
    %v954 = vpop.xlane.xlu0 %953
    %v955 = vsub.f32 %v950, %v954
    %v956 = vmul.f32 %v955, 1.442695
    %v957 = vpow.pop %v956
    %v958 = vsel %vm149, %v957, 0.0
    %959 = vadd.xlane.f32.xlu0 %v958
    %v960 = vpop.xlane.xlu0 %959
    %v961 = vrcp.pop %v960
    %v962 = vmul.f32 %v957, %v961
    %v964 = vsel %vm149, %v962, 0
    %966 = vmatpush.msra.mxu0 0.0
    %967 = vmatpush.msra.mxu0 0.0
    %968 = vmatpush.msra.mxu0 0.0
    %969 = vmatpush.msra.mxu0 0.0
    %970 = vmatpush.msra.mxu0 0.0
    %971 = vmatpush.msra.mxu0 0.0
    %972 = vmatpush.msra.mxu0 0.0
    %973 = vmatpush.msra.mxu0 0.0
    %974 = vmatpush.msra.mxu0 0.0
    %975 = vmatpush.msra.mxu0 0.0
    %976 = vmatpush.msra.mxu0 0.0
    %977 = vmatpush.msra.mxu0 0.0
    %978 = vmatpush.msra.mxu0 0.0
    %979 = vmatpush.msra.mxu0 0.0
    %980 = vmatpush.msra.mxu0 0.0
    %981 = vmatpush.msra.mxu0 %v864
    %982 = vmatmul.f32.gmra.mxu0 %v964
    %v983 = vpop.f32.mrf.mxu0
    %v984 = vadd.f32 0.0, %v983
    %985 = vdwg.mxu0
    %v986 = vpack.c.bf16 %v984, %v924
    %s987 = scalar_lea.vmem %s5, 12
    %v988 = vld [vmem:[%s987] sm:$0xf]
    %v990 = vsel %vm149, %v986, 0
    %v993 = vsel %vm493, %v988, 0
    %995 = vmatpush.bf16.msra.mxu0 0
    %996 = vmatpush.bf16.msra.mxu0 0
    %997 = vmatpush.bf16.msra.mxu0 0
    %998 = vmatpush.bf16.msra.mxu0 0
    %999 = vmatpush.bf16.msra.mxu0 0
    %1000 = vmatpush.bf16.msra.mxu0 0
    %1001 = vmatpush.bf16.msra.mxu0 0
    %1002 = vmatpush.bf16.msra.mxu0 %v993
    %1003 = vmatmul.bf16.gmra.mxu0 %v990
    %v1004 = vpop.f32.mrf.mxu0
    %v1005 = vadd.f32 0.0, %v1004
    %v1006 = vpop.f32.mrf.mxu0
    %v1007 = vadd.f32 0.0, %v1006
    %1008 = vdwg.mxu0
    %v1009 = vadd.f32 %v769, %v1005
    %v1010 = vadd.f32 %v770, %v1007
    %v1011 = vadd.f32 %v1009, %v43
    %v1012 = vadd.f32 %v1010, %v44
    %v1013 = vld [vmem:[%s6] sm:$0x1]
    %v1014 = vld [vmem:[%s7] sm:$0x1]
    %v1015 = vsel %vm69, %v1011, 0.0
    %1016 = vadd.xlane.f32.xlu0 %v1015
    %v1017 = vpop.xlane.xlu0 %1016
    %v1018 = vsel %vm69, %v1012, 0.0
    %1019 = vadd.xlane.f32.xlu0 %v1018
    %v1020 = vpop.xlane.xlu0 %1019
    %v1021 = vrcp.pop 32.0
    %v1022 = vmul.f32 32.0, %v1021
    %v1023 = vsub.f32 1.0, %v1022
    %v1024 = vmul.f32 %v1021, %v1023
    %v1025 = vadd.f32 %v1021, %v1024
    %vm1026 = vweird.f32 %v1021
    %v1027 = vsel %vm1026, %v1021, %v1025
    %v1028 = vmul.f32 %v1017, %v1027
    %v1029 = vmul.f32 %v1020, %v1027
    %v1030 = vsub.f32 %v1011, %v1028
    %v1031 = vsub.f32 %v1012, %v1029
    %v1032 = vmul.f32 %v1030, %v1030
    %v1033 = vmul.f32 %v1031, %v1031
    %v1034 = vsel %vm69, %v1032, 0.0
    %1035 = vadd.xlane.f32.xlu0 %v1034
    %v1036 = vpop.xlane.xlu0 %1035
    %v1037 = vsel %vm69, %v1033, 0.0
    %1038 = vadd.xlane.f32.xlu0 %v1037
    %v1039 = vpop.xlane.xlu0 %1038
    %v1040 = vmul.f32 %v1036, %v1027
    %v1041 = vmul.f32 %v1039, %v1027
    %v1042 = vadd.f32 %v1040, 1e-05
    %v1043 = vadd.f32 %v1041, 1e-05
    %v1044 = vrsqrt.pop %v1042
    %v1045 = vmul.f32 %v1044, %v1042
    %v1046 = vmul.f32 %v1045, %v1044
    %v1047 = vmul.f32 0.5, %v1046
    %v1048 = vsub.f32 1.5, %v1047
    %v1049 = vmul.f32 %v1044, %v1048
    %vm1050 = vweird.f32 %v1042
    %vm1051 = vweird.f32 %v1044
    %vm1052 = vmor %vm1050, %vm1051
    %v1053 = vsel %vm1052, %v1044, %v1049
    %v1054 = vrsqrt.pop %v1043
    %v1055 = vmul.f32 %v1054, %v1043
    %v1056 = vmul.f32 %v1055, %v1054
    %v1057 = vmul.f32 0.5, %v1056
    %v1058 = vsub.f32 1.5, %v1057
    %v1059 = vmul.f32 %v1054, %v1058
    %vm1060 = vweird.f32 %v1043
    %vm1061 = vweird.f32 %v1054
    %vm1062 = vmor %vm1060, %vm1061
    %v1063 = vsel %vm1062, %v1054, %v1059
    %v1064 = vmul.f32 %v1030, %v1053
    %v1065 = vmul.f32 %v1031, %v1063
    %v1067 = vperm.slane %v1013, 0
    %v1069 = vmul.f32 %v1064, %v1067
    %v1070 = vmul.f32 %v1065, %v1067
    %v1072 = vperm.slane %v1014, 0
    %v1074 = vadd.f32 %v1069, %v1072
    %v1075 = vadd.f32 %v1070, %v1072
    %v1076 = vpack.c.bf16 %v1075, %v1074
    %v1077 = vld [vmem:[%s8] sm:$0xf]
    %v1078 = vld [vmem:[%s8 + $0x4] sm:$0xf]
    %v1079 = vld [vmem:[%s8 + $0x8] sm:$0xf]
    %v1080 = vld [vmem:[%s8 + $0xc] sm:$0xf]
    %v1085 = vunpack.c.l.b16 %v1077
    %v1086 = vunpack.c.l.b16 %v1078
    %v1087 = vunpack.c.l.b16 %v1079
    %v1088 = vunpack.c.l.b16 %v1080
    %v1089 = vpack.c.b16 %v1086, %v1085
    %v1090 = vpack.c.b16 %v1088, %v1087
    %v1094 = vsel %vm69, %v1076, 0
    %1096 = vmatpush.bf16.msra.mxu0 0
    %1097 = vmatpush.bf16.msra.mxu0 0
    %1098 = vmatpush.bf16.msra.mxu0 0
    %1099 = vmatpush.bf16.msra.mxu0 0
    %1100 = vmatpush.bf16.msra.mxu0 0
    %1101 = vmatpush.bf16.msra.mxu0 0
    %1102 = vmatpush.bf16.msra.mxu0 %v1090
    %1103 = vmatpush.bf16.msra.mxu0 %v1089
    %1104 = vmatmul.bf16.gmra.mxu0 %v1094
    %v1105 = vpop.f32.mrf.mxu0
    %v1106 = vadd.f32 0.0, %v1105
    %v1107 = vpop.f32.mrf.mxu0
    %v1108 = vadd.f32 0.0, %v1107
    %1109 = vdwg.mxu0
    %v1110 = vmax.f32 %v1106, 0.0
    %v1111 = vmax.f32 %v1108, 0.0
    %v1112 = vpack.c.bf16 %v1111, %v1110
    %v1113 = vld [vmem:[%s9] sm:$0xf]
    %v1114 = vld [vmem:[%s9 + $0x4] sm:$0xf]
    %v1115 = vld [vmem:[%s9 + $0x8] sm:$0xf]
    %v1116 = vld [vmem:[%s9 + $0xc] sm:$0xf]
    %v1117 = vld [vmem:[%s9 + $0x10] sm:$0xf]
    %v1118 = vld [vmem:[%s9 + $0x14] sm:$0xf]
    %v1119 = vld [vmem:[%s9 + $0x18] sm:$0xf]
    %v1120 = vld [vmem:[%s9 + $0x1c] sm:$0xf]
    %v1129 = vunpack.c.l.b16 %v1113
    %v1130 = vunpack.c.l.b16 %v1114
    %v1131 = vunpack.c.l.b16 %v1115
    %v1132 = vunpack.c.l.b16 %v1116
    %v1133 = vunpack.c.l.b16 %v1117
    %v1134 = vunpack.c.l.b16 %v1118
    %v1135 = vunpack.c.l.b16 %v1119
    %v1136 = vunpack.c.l.b16 %v1120
    %v1137 = vpack.c.b16 %v1130, %v1129
    %v1138 = vpack.c.b16 %v1132, %v1131
    %v1139 = vpack.c.b16 %v1134, %v1133
    %v1140 = vpack.c.b16 %v1136, %v1135
    %vm1145 = vcmask 523264
    %v1147 = vsel %vm1145, %v1112, 0
    %1149 = vmatpush.bf16.msra.mxu0 0
    %1150 = vmatpush.bf16.msra.mxu0 0
    %1151 = vmatpush.bf16.msra.mxu0 0
    %1152 = vmatpush.bf16.msra.mxu0 0
    %1153 = vmatpush.bf16.msra.mxu0 %v1140
    %1154 = vmatpush.bf16.msra.mxu0 %v1139
    %1155 = vmatpush.bf16.msra.mxu0 %v1138
    %1156 = vmatpush.bf16.msra.mxu0 %v1137
    %1157 = vmatmul.bf16.gmra.mxu0 %v1147
    %v1158 = vpop.f32.mrf.mxu0
    %v1159 = vadd.f32 %v1074, %v1158
    %v1160 = vpop.f32.mrf.mxu0
    %v1161 = vadd.f32 %v1075, %v1160
    %1162 = vdwg.mxu0
    %v1163 = vld [vmem:[%s10] sm:$0x1]
    %v1164 = vld [vmem:[%s11] sm:$0x1]
    %v1165 = vsel %vm69, %v1159, 0.0
    %1166 = vadd.xlane.f32.xlu0 %v1165
    %v1167 = vpop.xlane.xlu0 %1166
    %v1168 = vsel %vm69, %v1161, 0.0
    %1169 = vadd.xlane.f32.xlu0 %v1168
    %v1170 = vpop.xlane.xlu0 %1169
    %v1171 = vmul.f32 %v1167, %v1027
    %v1172 = vmul.f32 %v1170, %v1027
    %v1173 = vsub.f32 %v1159, %v1171
    %v1174 = vsub.f32 %v1161, %v1172
    %v1175 = vmul.f32 %v1173, %v1173
    %v1176 = vmul.f32 %v1174, %v1174
    %v1177 = vsel %vm69, %v1175, 0.0
    %1178 = vadd.xlane.f32.xlu0 %v1177
    %v1179 = vpop.xlane.xlu0 %1178
    %v1180 = vsel %vm69, %v1176, 0.0
    %1181 = vadd.xlane.f32.xlu0 %v1180
    %v1182 = vpop.xlane.xlu0 %1181
    %v1183 = vmul.f32 %v1179, %v1027
    %v1184 = vmul.f32 %v1182, %v1027
    %v1185 = vadd.f32 %v1183, 1e-05
    %v1186 = vadd.f32 %v1184, 1e-05
    %v1187 = vrsqrt.pop %v1185
    %v1188 = vmul.f32 %v1187, %v1185
    %v1189 = vmul.f32 %v1188, %v1187
    %v1190 = vmul.f32 0.5, %v1189
    %v1191 = vsub.f32 1.5, %v1190
    %v1192 = vmul.f32 %v1187, %v1191
    %vm1193 = vweird.f32 %v1185
    %vm1194 = vweird.f32 %v1187
    %vm1195 = vmor %vm1193, %vm1194
    %v1196 = vsel %vm1195, %v1187, %v1192
    %v1197 = vrsqrt.pop %v1186
    %v1198 = vmul.f32 %v1197, %v1186
    %v1199 = vmul.f32 %v1198, %v1197
    %v1200 = vmul.f32 0.5, %v1199
    %v1201 = vsub.f32 1.5, %v1200
    %v1202 = vmul.f32 %v1197, %v1201
    %vm1203 = vweird.f32 %v1186
    %vm1204 = vweird.f32 %v1197
    %vm1205 = vmor %vm1203, %vm1204
    %v1206 = vsel %vm1205, %v1197, %v1202
    %v1207 = vmul.f32 %v1173, %v1196
    %v1208 = vmul.f32 %v1174, %v1206
    %v1210 = vperm.slane %v1163, 0
    %v1212 = vmul.f32 %v1207, %v1210
    %v1213 = vmul.f32 %v1208, %v1210
    %v1215 = vperm.slane %v1164, 0
    %v1217 = vadd.f32 %v1212, %v1215
    %v1218 = vadd.f32 %v1213, %v1215
    %1219 = vst.msk [vmem:[#allocation2] sm:$0xff] %vm69, %v1217
    %1220 = vst.msk [vmem:[#allocation2 + $0x8] sm:$0xff] %vm69, %v1218
    // Predicated region
    $region50: #{encoder_layer.1} parent=1 // pred_check
      _
    $region51: #{encoder_layer.1} parent=1 // pred_check_branch
      %1222 = sbr.rel (0) target = $region53
    $region52: #{encoder_layer.1} parent=1 // pred_region
      %1224 = vsyncadd [#allocation3], 0
      %s1225 = sshll.u32 [#allocation2], 4
      %s1226 = int_to_ptr.vmem [resolvable:$true] %s1225
      %s1227 = sshll.u32 %s12, 4
      %s1228 = int_to_ptr.hbm [resolvable:$true] %s1227
      %1233 = dma.vmem_to_hbm [thread:$0]  %s1226, 256, %s1228, [#allocation3], 128, 128, 8
    $region53: #{encoder_layer.1} parent=1 // pred_fallthru
      _
    // Predicated region
    $region54: #{encoder_layer.1} parent=1 // pred_check
      _
    $region55: #{encoder_layer.1} parent=1 // pred_check_branch
      %1235 = sbr.rel (0) target = $region57
    $region56: #{encoder_layer.1} parent=1 // pred_region
      %1237 = dma.done [#allocation3], 256
    $region57: #{encoder_layer.1} parent=1 // pred_fallthru
      _
    %1238 = vsyncpa [#allocation3], 1

</llo_original>
